<compile_context>
chip_gen: v7x
topology: tpu7x:2x2x1
jax: 0.10.0
libtpu: 0.0.40
codegen_flags: <defaults>
</compile_context>

<pallas_src>
import math
import functools

import jax
import jax.numpy as jnp
from jax.experimental import pallas as pl
from jax.experimental.pallas import tpu as pltpu

_NEG_BIG = -1e30


# ----------------------------------------------------------------------------
# Pallas kernel: one batch block per grid step.
# ----------------------------------------------------------------------------
def _episode_mha_kernel(kpm_ref, qres_ref, key_ref,
                        w_q_t_ref, b_q_ref, w_kv_t_ref, b_kv_ref,
                        w_out_t_ref, b_out_ref,
                        *out_refs,
                        embed_dim, num_heads, query_length,
                        use_residual, has_kpm, need_weights, precise):
    if need_weights:
        out_ref, attnw_ref = out_refs
    else:
        (out_ref,) = out_refs
        attnw_ref = None

    E = embed_dim
    H = num_heads
    Q = query_length
    Dh = E // H
    f32 = jnp.float32
    cd = jnp.float32 if precise else jnp.bfloat16

    x = key_ref[...]                                     # [BB, K, E] (compute dtype)
    BB, K, _ = x.shape
    q_res = qres_ref[...]                                # [BB, Q, E] f32 (query rows)

    # ---- K/V projection over all K rows (fused [E, 2E] matmul), cast once ----
    kv = jnp.dot(x.reshape(BB * K, E), w_kv_t_ref[...],
                 preferred_element_type=f32) + b_kv_ref[...]
    kv = kv.astype(cd).reshape(BB, K, 2 * E)
    k_all = kv[:, :, 0:E]                                # [BB, K, E]
    v_all = kv[:, :, E:2 * E]                            # [BB, K, E]

    # ---- Q projection only over the last Q rows (scale folded into weights) ----
    q = jnp.dot(q_res.astype(cd).reshape(BB * Q, E), w_q_t_ref[...],
                preferred_element_type=f32) + b_q_ref[...]
    q_all = q.astype(cd).reshape(BB, Q, E)               # [BB, Q, E]

    # ---- mask built in-kernel: causal triu (+ key_padding + eye rescue) ----
    qi = jax.lax.broadcasted_iota(jnp.int32, (Q, K), 0) + (K - Q)   # absolute query position
    kj = jax.lax.broadcasted_iota(jnp.int32, (Q, K), 1)
    causal = kj > qi                                                 # [Q, K]
    if has_kpm:
        kpm = kpm_ref[...] > 0.5                                     # [BB, 1, K]
        mask = jnp.logical_or(causal[None, :, :], kpm)               # [BB, Q, K]
        mask = jnp.logical_and(mask, (kj != qi)[None, :, :])         # keep self-position open
    else:
        mask = jnp.broadcast_to(causal[None, :, :], (BB, Q, K))

    out_acc = None                                        # f32 [BB, Q, E]
    attnw_acc = None                                      # f32 [BB, Q, K]
    for h in range(H):                                    # static, unrolled (H is small)
        sl = slice(h * Dh, (h + 1) * Dh)
        q_h = q_all[:, :, sl]
        k_h = k_all[:, :, sl]
        v_h = v_all[:, :, sl]

        s = jnp.einsum('bqd,bkd->bqk', q_h, k_h,
                       preferred_element_type=f32)        # [BB, Q, K] f32
        s = jnp.where(mask, _NEG_BIG, s)
        s = s - jnp.max(s, axis=-1, keepdims=True)

        if precise:
            p = jnp.exp(s)
            p = p / jnp.sum(p, axis=-1, keepdims=True)
        else:
            p = jnp.exp(s.astype(cd))                     # bf16 exp on the EUP
            denom = jnp.sum(p, axis=-1, keepdims=True, dtype=f32)
            p = p * pl.reciprocal(denom, approx=True).astype(cd)

        if need_weights:
            p32 = p.astype(f32)
            attnw_acc = p32 if attnw_acc is None else attnw_acc + p32

        o_h = jnp.einsum('bqk,bkd->bqd', p, v_h,
                         preferred_element_type=f32)      # [BB, Q, Dh] f32

        # Fold the output projection into the head loop (no [BB,Q,E] slab / concat).
        contrib = jnp.dot(o_h.reshape(BB * Q, Dh).astype(cd), w_out_t_ref[sl, :],
                          preferred_element_type=f32).reshape(BB, Q, E)
        out_acc = contrib if out_acc is None else out_acc + contrib

    out = out_acc + b_out_ref[...]
    if use_residual:
        out = out + q_res                                 # f32 residual
    out_ref[...] = out.astype(out_ref.dtype)
    if need_weights:
        attnw_ref[...] = (attnw_acc * (1.0 / H)).astype(attnw_ref.dtype)


# ----------------------------------------------------------------------------
# Generation-aware hardware info (VMEM capacity, single vs multi TensorCore).
# ----------------------------------------------------------------------------
def _tpu_vmem_and_cores():
    vmem_cap = None
    try:
        vmem_cap = int(pltpu.get_tpu_info().vmem_capacity_bytes)
    except Exception:
        vmem_cap = None
    kind = ""
    try:
        kind = jax.devices()[0].device_kind.lower()
    except Exception:
        pass
    single_core = any(t in kind for t in ("v5 lite", "v5litepod", "v5e", "v6 lite", "v6e"))
    if vmem_cap is None:
        if "v2" in kind or "v3" in kind:
            vmem_cap = 16 * 1024 * 1024
        elif single_core or "v4" in kind or "v5" in kind or "v6" in kind:
            vmem_cap = 128 * 1024 * 1024
        else:
            vmem_cap = 64 * 1024 * 1024        # conservative default (v7x-class)
    return vmem_cap, single_core


# ----------------------------------------------------------------------------
# Batch-block picker: biggest tile whose REAL residents fit the VMEM budget.
# ----------------------------------------------------------------------------
def _pick_batch_block(batch, K, E, Q, H, *, precise, need_weights,
                      vmem_limit_bytes, require_two_steps):
    cdb = 4 if precise else 2
    f32b = 4
    attnw_b = 4 if precise else 2
    Dh = E // H
    # Double-buffered pipelined I/O tiles, per batch element.
    io = 2 * (K * E * cdb          # key tile
              + K * f32b           # padding row
              + Q * E * f32b       # f32 query/residual rows
              + Q * E * f32b)      # output tile
    if need_weights:
        io += 2 * Q * K * attnw_b  # attention-weight output tile
    # In-kernel live intermediates, per batch element (conservative).
    interm = (K * 2 * E * (f32b + 2 * cdb)   # kv f32 matmul result + cast + k/v slices
              + Q * E * (f32b + cdb)         # q projection + cast
              + Q * K * (4 * f32b + cdb)     # mask + score/prob temporaries + attnw acc
              + Q * E * f32b                 # output-projection accumulator
              + 3 * K * Dh * cdb)            # per-head operand slice copies
    per_elem = int(1.25 * (io + interm))
    # Invariant weights (double-buffered by the pipeline) + fixed slack.
    fixed = 2 * (4 * E * E * cdb + 4 * E * f32b) + (2 << 20)
    budget = int(0.8 * vmem_limit_bytes) - fixed
    best = 1
    for bb in range(1, batch + 1):
        if batch % bb:
            continue
        if bb * per_elem > budget:
            continue
        if require_two_steps and batch >= 2 and batch // bb < 2:
            continue   # keep >= 2 grid steps only on multi-TensorCore chips
        best = bb
    return best


# ----------------------------------------------------------------------------
# Wrapper: EpisodeMultiheadAttentionBlock.forward
# ----------------------------------------------------------------------------
def episode_mha_block(key, query_length, key_padding_mask, params, *, num_heads,
                      use_residual=True, need_weights=True, precise=False,
                      batch_block=None):
    B, K, E = key.shape
    Q = int(query_length)
    H = num_heads
    assert E % H == 0
    Dh = E // H
    w_in, b_in, w_out, b_out = params
    cd = jnp.float32 if precise else jnp.bfloat16

    # Host-side weight prep: split q / kv, fold 1/sqrt(Dh) into q, pre-transpose, cast.
    scale = 1.0 / math.sqrt(Dh)
    w_q_t = (w_in[:E] * scale).T.astype(cd)                      # [E, E]
    b_q = (b_in[:E] * scale).reshape(1, E).astype(jnp.float32)   # [1, E]
    w_kv_t = w_in[E:].T.astype(cd)                               # [E, 2E]
    b_kv = b_in[E:].reshape(1, 2 * E).astype(jnp.float32)        # [1, 2E]
    w_out_t = w_out.T.astype(cd)                                 # [E, E]
    b_out_2d = b_out.reshape(1, E).astype(jnp.float32)           # [1, E]

    key_c = key.astype(cd)                                       # [B, K, E]
    q_res = key[:, K - Q:, :].astype(jnp.float32)                # [B, Q, E] f32 residual/q rows

    # Thin [B, 1, K] padding row (module's first-column extension) instead of a [B,Q,K] mask.
    has_kpm = key_padding_mask is not None
    if has_kpm:
        kpm = key_padding_mask.astype(jnp.float32)
        L = kpm.shape[1]
        if L < K:
            pad = jnp.repeat(kpm[:, :1], K - L, axis=1)
            kpm = jnp.concatenate([pad, kpm], axis=1)
        kpm3 = kpm.reshape(B, 1, K)
    else:
        kpm3 = jnp.zeros((B, 1, K), jnp.float32)

    attnw_dtype = jnp.float32 if precise else jnp.bfloat16

    vmem_cap, single_core = _tpu_vmem_and_cores()
    vmem_limit = max(16 * 1024 * 1024, min(int(0.75 * vmem_cap), 112 * 1024 * 1024))

    BB = batch_block if batch_block is not None else _pick_batch_block(
        B, K, E, Q, H, precise=precise, need_weights=need_weights,
        vmem_limit_bytes=vmem_limit, require_two_steps=not single_core)
    assert B % BB == 0

    kernel = functools.partial(
        _episode_mha_kernel, embed_dim=E, num_heads=H, query_length=Q,
        use_residual=use_residual, has_kpm=has_kpm, need_weights=need_weights,
        precise=precise)

    out_shapes = [jax.ShapeDtypeStruct((B, Q, E), jnp.float32)]
    out_specs = [pl.BlockSpec((BB, Q, E), lambda b: (b, 0, 0))]
    if need_weights:
        out_shapes.append(jax.ShapeDtypeStruct((B, Q, K), attnw_dtype))
        out_specs.append(pl.BlockSpec((BB, Q, K), lambda b: (b, 0, 0)))

    results = pl.pallas_call(
        kernel,
        out_shape=tuple(out_shapes),
        grid_spec=pltpu.PrefetchScalarGridSpec(
            num_scalar_prefetch=0,
            grid=(B // BB,),
            in_specs=[
                pl.BlockSpec((BB, 1, K), lambda b: (b, 0, 0)),   # key-padding row (f32)
                pl.BlockSpec((BB, Q, E), lambda b: (b, 0, 0)),   # f32 query rows (residual)
                pl.BlockSpec((BB, K, E), lambda b: (b, 0, 0)),   # key (compute dtype)
                pl.BlockSpec((E, E), lambda b: (0, 0)),          # W_q^T (scale folded)
                pl.BlockSpec((1, E), lambda b: (0, 0)),          # b_q (scaled, f32)
                pl.BlockSpec((E, 2 * E), lambda b: (0, 0)),      # W_kv^T
                pl.BlockSpec((1, 2 * E), lambda b: (0, 0)),      # b_kv (f32)
                pl.BlockSpec((E, E), lambda b: (0, 0)),          # W_out^T
                pl.BlockSpec((1, E), lambda b: (0, 0)),          # b_out (f32)
            ],
            out_specs=tuple(out_specs),
        ),
        compiler_params=pltpu.CompilerParams(
            dimension_semantics=("parallel",),
            vmem_limit_bytes=vmem_limit,
        ),
    )(kpm3, q_res, key_c, w_q_t, b_q, w_kv_t, b_kv, w_out_t, b_out_2d)

    if need_weights:
        out, attnw = results
        return out, attnw
    return results[0]


# ----------------------------------------------------------------------------
# Pure-JAX reference (mirrors torch.nn.MultiheadAttention with bool attn_mask).
# ----------------------------------------------------------------------------
def _build_bool_mask(batch, key_length, query_length, key_padding_mask):
    K, Q = key_length, query_length
    triu = jnp.triu(jnp.ones((K, K), dtype=bool), k=1)
    attn_mask = triu[-Q:]
    if key_padding_mask is None:
        return jnp.broadcast_to(attn_mask[None], (batch, Q, K))
    kpm = key_padding_mask.astype(bool)
    L = kpm.shape[1]
    if L < K:
        pad = jnp.repeat(kpm[:, :1], K - L, axis=1)
        kpm = jnp.concatenate([pad, kpm], axis=1)
    m = jnp.logical_or(attn_mask[None], kpm[:, None, :])
    eye = ~jnp.eye(K, dtype=bool)[-Q:]
    return jnp.logical_and(m, eye[None])


def ref_forward(key, query_length, key_padding_mask, params, *, num_heads,
                use_residual=True):
    B, K, E = key.shape
    Q = query_length
    H = num_heads
    Dh = E // H
    w_in, b_in, w_out, b_out = params
    mask = _build_bool_mask(B, K, Q, key_padding_mask)               # True = masked
    query = key[:, -Q:]
    q = query @ w_in[:E].T + b_in[:E]
    k = key @ w_in[E:2 * E].T + b_in[E:2 * E]
    v = key @ w_in[2 * E:].T + b_in[2 * E:]
    qh = q.reshape(B, Q, H, Dh).transpose(0, 2, 1, 3) / math.sqrt(Dh)
    kh = k.reshape(B, K, H, Dh).transpose(0, 2, 1, 3)
    vh = v.reshape(B, K, H, Dh).transpose(0, 2, 1, 3)
    s = jnp.einsum('bhqd,bhkd->bhqk', qh, kh)
    s = jnp.where(mask[:, None], -jnp.inf, s)
    p = jax.nn.softmax(s, axis=-1)
    o = jnp.einsum('bhqk,bhkd->bhqd', p, vh).transpose(0, 2, 1, 3).reshape(B, Q, E)
    out = o @ w_out.T + b_out
    if use_residual:
        out = out + query
    return out, p.mean(axis=1)


# ----------------------------------------------------------------------------
if __name__ == "__main__":
    B, K_len, E, H, Q = 2, 8, 32, 4, 4     # small shapes: batch=2, key_len=8, embed=32
    kpm_len = 6                            # key_padding_mask shorter than key_length

    root = jax.random.PRNGKey(0)
    k1, k2, k3, k4, k5, k6 = jax.random.split(root, 6)

    key_inp = jax.random.normal(k1, (B, K_len, E), jnp.float32)
    w_in = jax.random.normal(k2, (3 * E, E), jnp.float32) * 0.1    # in_proj_weight
    b_in = jax.random.normal(k3, (3 * E,), jnp.float32) * 0.1      # in_proj_bias
    w_out = jax.random.normal(k4, (E, E), jnp.float32) * 0.1       # out_proj.weight
    b_out = jax.random.normal(k5, (E,), jnp.float32) * 0.1         # out_proj.bias
    key_padding_mask = jax.random.bernoulli(k6, 0.3, (B, kpm_len))  # True = masked
    params = (w_in, b_in, w_out, b_out)

    ref_out, ref_attnw = ref_forward(key_inp, Q, key_padding_mask, params,
                                     num_heads=H, use_residual=True)

    # 1) precise path (f32 MXU) -- tight numerical check
    out, attnw = episode_mha_block(key_inp, Q, key_padding_mask, params,
                                   num_heads=H, use_residual=True, precise=True)
    jax.block_until_ready((out, attnw))
    assert out.shape == (B, Q, E) and attnw.shape == (B, Q, K_len)
    assert jnp.allclose(out, ref_out, atol=1e-4, rtol=1e-4)
    assert jnp.allclose(attnw, ref_attnw, atol=1e-4, rtol=1e-4)

    # 2) fast path (bf16 MXU operands, bf16 exp, approx reciprocal) -- looser check
    out_f, attnw_f = episode_mha_block(key_inp, Q, key_padding_mask, params,
                                       num_heads=H, use_residual=True, precise=False)
    jax.block_until_ready((out_f, attnw_f))
    assert jnp.allclose(out_f, ref_out, atol=5e-2, rtol=5e-2)
    assert jnp.allclose(attnw_f.astype(jnp.float32), ref_attnw, atol=3e-2, rtol=5e-2)

    # 3) no key_padding_mask (causal-only branch)
    out_n, attnw_n = episode_mha_block(key_inp, Q, None, params,
                                       num_heads=H, use_residual=True, precise=True)
    ref_out_n, ref_attnw_n = ref_forward(key_inp, Q, None, params,
                                         num_heads=H, use_residual=True)
    jax.block_until_ready((out_n, attnw_n))
    assert jnp.allclose(out_n, ref_out_n, atol=1e-4, rtol=1e-4)
    assert jnp.allclose(attnw_n, ref_attnw_n, atol=1e-4, rtol=1e-4)

    # 4) need_weights=False perf path (output only)
    out_nw = episode_mha_block(key_inp, Q, key_padding_mask, params,
                               num_heads=H, use_residual=True, precise=True,
                               need_weights=False)
    jax.block_until_ready(out_nw)
    assert jnp.allclose(out_nw, ref_out, atol=1e-4, rtol=1e-4)

    print("KERNEL_OK")
</pallas_src>

<mosaic_0001>
module attributes {stable_mosaic.version = 11 : i64} {
  func.func @_episode_mha_kernel(%arg0: i32, %arg1: memref<1x1x8xf32, #tpu.memory_space<vmem>>, %arg2: memref<1x4x32xf32, #tpu.memory_space<vmem>>, %arg3: memref<1x8x32xf32, #tpu.memory_space<vmem>>, %arg4: memref<32x32xf32, #tpu.memory_space<vmem>>, %arg5: memref<1x32xf32, #tpu.memory_space<vmem>>, %arg6: memref<32x64xf32, #tpu.memory_space<vmem>>, %arg7: memref<1x64xf32, #tpu.memory_space<vmem>>, %arg8: memref<32x32xf32, #tpu.memory_space<vmem>>, %arg9: memref<1x32xf32, #tpu.memory_space<vmem>>, %arg10: memref<1x4x32xf32, #tpu.memory_space<vmem>>, %arg11: memref<1x4x8xf32, #tpu.memory_space<vmem>>) attributes {dimension_semantics = [#tpu.dimension_semantics<parallel>], iteration_bounds = array<i64: 2>, scalar_prefetch = 0 : i64, scratch_operands = 0 : i64, tpu.core_type = #tpu.core_type<tc>, window_params = [{transform_indices = @transform_0, window_bounds = array<i64: 1, 1, 8>}, {transform_indices = @transform_1, window_bounds = array<i64: 1, 4, 32>}, {transform_indices = @transform_2, window_bounds = array<i64: 1, 8, 32>}, {pipeline_mode = #tpu.pipeline_mode<synchronous>, transform_indices = @transform_3, window_bounds = array<i64: 32, 32>}, {pipeline_mode = #tpu.pipeline_mode<synchronous>, transform_indices = @transform_4, window_bounds = array<i64: 1, 32>}, {pipeline_mode = #tpu.pipeline_mode<synchronous>, transform_indices = @transform_5, window_bounds = array<i64: 32, 64>}, {pipeline_mode = #tpu.pipeline_mode<synchronous>, transform_indices = @transform_6, window_bounds = array<i64: 1, 64>}, {pipeline_mode = #tpu.pipeline_mode<synchronous>, transform_indices = @transform_7, window_bounds = array<i64: 32, 32>}, {pipeline_mode = #tpu.pipeline_mode<synchronous>, transform_indices = @transform_8, window_bounds = array<i64: 1, 32>}, {transform_indices = @transform_9, window_bounds = array<i64: 1, 4, 32>}, {transform_indices = @transform_10, window_bounds = array<i64: 1, 4, 8>}]} {
    %c0 = arith.constant 0 : index
    %c0_0 = arith.constant 0 : index
    %c0_1 = arith.constant 0 : index
    %0 = vector.load %arg3[%c0, %c0_0, %c0_1] : memref<1x8x32xf32, #tpu.memory_space<vmem>>, vector<1x8x32xf32>
    %c0_2 = arith.constant 0 : index
    %c0_3 = arith.constant 0 : index
    %c0_4 = arith.constant 0 : index
    %1 = vector.load %arg2[%c0_2, %c0_3, %c0_4] : memref<1x4x32xf32, #tpu.memory_space<vmem>>, vector<1x4x32xf32>
    %2 = vector.shape_cast %0 : vector<1x8x32xf32> to vector<8x32xf32>
    %c0_5 = arith.constant 0 : index
    %c0_6 = arith.constant 0 : index
    %3 = vector.load %arg6[%c0_5, %c0_6] : memref<32x64xf32, #tpu.memory_space<vmem>>, vector<32x64xf32>
    %cst = arith.constant dense<0.000000e+00> : vector<8x64xf32>
    %4 = tpu.matmul %2, %3, %cst {dimension_numbers = #tpu.dot_dimension_numbers<[1], [0], [0], [1], [0, 0, 1, 1], [], []>} : vector<8x32xf32>, vector<32x64xf32>, vector<8x64xf32> -> vector<8x64xf32>
    %c0_7 = arith.constant 0 : index
    %c0_8 = arith.constant 0 : index
    %5 = vector.load %arg7[%c0_7, %c0_8] : memref<1x64xf32, #tpu.memory_space<vmem>>, vector<1x64xf32>
    %6 = vector.broadcast %5 : vector<1x64xf32> to vector<8x64xf32>
    %7 = arith.addf %4, %6 : vector<8x64xf32>
    %8 = vector.shape_cast %7 : vector<8x64xf32> to vector<1x8x64xf32>
    %9 = vector.extract_strided_slice %8 {offsets = [0, 0, 0], sizes = [1, 8, 32], strides = [1, 1, 1]} : vector<1x8x64xf32> to vector<1x8x32xf32>
    %10 = vector.extract_strided_slice %8 {offsets = [0, 0, 32], sizes = [1, 8, 32], strides = [1, 1, 1]} : vector<1x8x64xf32> to vector<1x8x32xf32>
    %11 = vector.shape_cast %1 : vector<1x4x32xf32> to vector<4x32xf32>
    %c0_9 = arith.constant 0 : index
    %c0_10 = arith.constant 0 : index
    %12 = vector.load %arg4[%c0_9, %c0_10] : memref<32x32xf32, #tpu.memory_space<vmem>>, vector<32x32xf32>
    %cst_11 = arith.constant dense<0.000000e+00> : vector<4x32xf32>
    %13 = tpu.matmul %11, %12, %cst_11 {dimension_numbers = #tpu.dot_dimension_numbers<[1], [0], [0], [1], [0, 0, 1, 1], [], []>} : vector<4x32xf32>, vector<32x32xf32>, vector<4x32xf32> -> vector<4x32xf32>
    %c0_12 = arith.constant 0 : index
    %c0_13 = arith.constant 0 : index
    %14 = vector.load %arg5[%c0_12, %c0_13] : memref<1x32xf32, #tpu.memory_space<vmem>>, vector<1x32xf32>
    %15 = vector.broadcast %14 : vector<1x32xf32> to vector<4x32xf32>
    %16 = arith.addf %13, %15 : vector<4x32xf32>
    %17 = vector.shape_cast %16 : vector<4x32xf32> to vector<1x4x32xf32>
    %18 = tpu.iota {dimensions = array<i32: 0>} : vector<4x8xi32>
    %c4_i32 = arith.constant 4 : i32
    %19 = vector.broadcast %c4_i32 : i32 to vector<4x8xi32>
    %20 = arith.addi %18, %19 : vector<4x8xi32>
    %21 = tpu.iota {dimensions = array<i32: 1>} : vector<4x8xi32>
    %22 = arith.cmpi sgt, %21, %20 : vector<4x8xi32>
    %c0_14 = arith.constant 0 : index
    %c0_15 = arith.constant 0 : index
    %c0_16 = arith.constant 0 : index
    %23 = vector.load %arg1[%c0_14, %c0_15, %c0_16] : memref<1x1x8xf32, #tpu.memory_space<vmem>>, vector<1x1x8xf32>
    %cst_17 = arith.constant 5.000000e-01 : f32
    %24 = vector.broadcast %cst_17 : f32 to vector<1x1x8xf32>
    %25 = arith.cmpf ogt, %23, %24 : vector<1x1x8xf32>
    %26 = vector.shape_cast %22 : vector<4x8xi1> to vector<1x4x8xi1>
    %27 = vector.broadcast %25 : vector<1x1x8xi1> to vector<1x4x8xi1>
    %28 = arith.ori %26, %27 : vector<1x4x8xi1>
    %29 = arith.cmpi ne, %21, %20 : vector<4x8xi32>
    %30 = vector.shape_cast %29 : vector<4x8xi1> to vector<1x4x8xi1>
    %31 = arith.andi %28, %30 : vector<1x4x8xi1>
    %32 = vector.extract_strided_slice %17 {offsets = [0, 0, 0], sizes = [1, 4, 8], strides = [1, 1, 1]} : vector<1x4x32xf32> to vector<1x4x8xf32>
    %33 = vector.extract_strided_slice %9 {offsets = [0, 0, 0], sizes = [1, 8, 8], strides = [1, 1, 1]} : vector<1x8x32xf32> to vector<1x8x8xf32>
    %34 = vector.extract_strided_slice %10 {offsets = [0, 0, 0], sizes = [1, 8, 8], strides = [1, 1, 1]} : vector<1x8x32xf32> to vector<1x8x8xf32>
    "tpu.trace_start"() <{level = 10 : i32, message = "bqd,bkd->bqk"}> : () -> ()
    %cst_18 = arith.constant dense<0.000000e+00> : vector<1x4x8xf32>
    %35 = tpu.matmul %32, %33, %cst_18 {dimension_numbers = #tpu.dot_dimension_numbers<[2], [2], [1], [1], [0, 0, 0, 1, 1, 1], [0], [0]>} : vector<1x4x8xf32>, vector<1x8x8xf32>, vector<1x4x8xf32> -> vector<1x4x8xf32>
    %cst_19 = arith.constant -1.000000e+30 : f32
    "tpu.trace_stop"() : () -> ()
    %36 = vector.broadcast %cst_19 : f32 to vector<1x4x8xf32>
    %37 = arith.select %31, %36, %35 : vector<1x4x8xi1>, vector<1x4x8xf32>
    %cst_20 = arith.constant dense<0xFF800000> : vector<1x4xf32>
    %38 = vector.multi_reduction <maximumf>, %37, %cst_20 [2] : vector<1x4x8xf32> to vector<1x4xf32>
    %39 = vector.shape_cast %38 : vector<1x4xf32> to vector<1x4x1xf32>
    %40 = vector.broadcast %39 : vector<1x4x1xf32> to vector<1x4x8xf32>
    %41 = arith.subf %37, %40 : vector<1x4x8xf32>
    %42 = math.exp %41 : vector<1x4x8xf32>
    %cst_21 = arith.constant dense<0.000000e+00> : vector<1x4xf32>
    %43 = vector.multi_reduction <add>, %42, %cst_21 [2] : vector<1x4x8xf32> to vector<1x4xf32>
    %44 = vector.shape_cast %43 : vector<1x4xf32> to vector<1x4x1xf32>
    %45 = vector.broadcast %44 : vector<1x4x1xf32> to vector<1x4x8xf32>
    %46 = arith.divf %42, %45 : vector<1x4x8xf32>
    "tpu.trace_start"() <{level = 10 : i32, message = "bqk,bkd->bqd"}> : () -> ()
    %cst_22 = arith.constant dense<0.000000e+00> : vector<1x4x8xf32>
    %47 = tpu.matmul %46, %34, %cst_22 {dimension_numbers = #tpu.dot_dimension_numbers<[2], [1], [1], [2], [0, 0, 0, 1, 1, 2], [0], [0]>} : vector<1x4x8xf32>, vector<1x8x8xf32>, vector<1x4x8xf32> -> vector<1x4x8xf32>
    "tpu.trace_stop"() : () -> ()
    %48 = vector.shape_cast %47 : vector<1x4x8xf32> to vector<4x8xf32>
    %c0_23 = arith.constant 0 : index
    %c0_24 = arith.constant 0 : index
    %49 = vector.load %arg8[%c0_23, %c0_24] : memref<32x32xf32, #tpu.memory_space<vmem>>, vector<8x32xf32>
    %cst_25 = arith.constant dense<0.000000e+00> : vector<4x32xf32>
    %50 = tpu.matmul %48, %49, %cst_25 {dimension_numbers = #tpu.dot_dimension_numbers<[1], [0], [0], [1], [0, 0, 1, 1], [], []>} : vector<4x8xf32>, vector<8x32xf32>, vector<4x32xf32> -> vector<4x32xf32>
    %51 = vector.shape_cast %50 : vector<4x32xf32> to vector<1x4x32xf32>
    %52 = vector.extract_strided_slice %17 {offsets = [0, 0, 8], sizes = [1, 4, 8], strides = [1, 1, 1]} : vector<1x4x32xf32> to vector<1x4x8xf32>
    %53 = vector.extract_strided_slice %9 {offsets = [0, 0, 8], sizes = [1, 8, 8], strides = [1, 1, 1]} : vector<1x8x32xf32> to vector<1x8x8xf32>
    %54 = vector.extract_strided_slice %10 {offsets = [0, 0, 8], sizes = [1, 8, 8], strides = [1, 1, 1]} : vector<1x8x32xf32> to vector<1x8x8xf32>
    "tpu.trace_start"() <{level = 10 : i32, message = "bqd,bkd->bqk"}> : () -> ()
    %cst_26 = arith.constant dense<0.000000e+00> : vector<1x4x8xf32>
    %55 = tpu.matmul %52, %53, %cst_26 {dimension_numbers = #tpu.dot_dimension_numbers<[2], [2], [1], [1], [0, 0, 0, 1, 1, 1], [0], [0]>} : vector<1x4x8xf32>, vector<1x8x8xf32>, vector<1x4x8xf32> -> vector<1x4x8xf32>
    %cst_27 = arith.constant -1.000000e+30 : f32
    "tpu.trace_stop"() : () -> ()
    %56 = vector.broadcast %cst_27 : f32 to vector<1x4x8xf32>
    %57 = arith.select %31, %56, %55 : vector<1x4x8xi1>, vector<1x4x8xf32>
    %cst_28 = arith.constant dense<0xFF800000> : vector<1x4xf32>
    %58 = vector.multi_reduction <maximumf>, %57, %cst_28 [2] : vector<1x4x8xf32> to vector<1x4xf32>
    %59 = vector.shape_cast %58 : vector<1x4xf32> to vector<1x4x1xf32>
    %60 = vector.broadcast %59 : vector<1x4x1xf32> to vector<1x4x8xf32>
    %61 = arith.subf %57, %60 : vector<1x4x8xf32>
    %62 = math.exp %61 : vector<1x4x8xf32>
    %cst_29 = arith.constant dense<0.000000e+00> : vector<1x4xf32>
    %63 = vector.multi_reduction <add>, %62, %cst_29 [2] : vector<1x4x8xf32> to vector<1x4xf32>
    %64 = vector.shape_cast %63 : vector<1x4xf32> to vector<1x4x1xf32>
    %65 = vector.broadcast %64 : vector<1x4x1xf32> to vector<1x4x8xf32>
    %66 = arith.divf %62, %65 : vector<1x4x8xf32>
    %67 = arith.addf %46, %66 : vector<1x4x8xf32>
    "tpu.trace_start"() <{level = 10 : i32, message = "bqk,bkd->bqd"}> : () -> ()
    %cst_30 = arith.constant dense<0.000000e+00> : vector<1x4x8xf32>
    %68 = tpu.matmul %66, %54, %cst_30 {dimension_numbers = #tpu.dot_dimension_numbers<[2], [1], [1], [2], [0, 0, 0, 1, 1, 2], [0], [0]>} : vector<1x4x8xf32>, vector<1x8x8xf32>, vector<1x4x8xf32> -> vector<1x4x8xf32>
    "tpu.trace_stop"() : () -> ()
    %69 = vector.shape_cast %68 : vector<1x4x8xf32> to vector<4x8xf32>
    %c8 = arith.constant 8 : index
    %c0_31 = arith.constant 0 : index
    %70 = vector.load %arg8[%c8, %c0_31] : memref<32x32xf32, #tpu.memory_space<vmem>>, vector<8x32xf32>
    %cst_32 = arith.constant dense<0.000000e+00> : vector<4x32xf32>
    %71 = tpu.matmul %69, %70, %cst_32 {dimension_numbers = #tpu.dot_dimension_numbers<[1], [0], [0], [1], [0, 0, 1, 1], [], []>} : vector<4x8xf32>, vector<8x32xf32>, vector<4x32xf32> -> vector<4x32xf32>
    %72 = vector.shape_cast %71 : vector<4x32xf32> to vector<1x4x32xf32>
    %73 = arith.addf %51, %72 : vector<1x4x32xf32>
    %74 = vector.extract_strided_slice %17 {offsets = [0, 0, 16], sizes = [1, 4, 8], strides = [1, 1, 1]} : vector<1x4x32xf32> to vector<1x4x8xf32>
    %75 = vector.extract_strided_slice %9 {offsets = [0, 0, 16], sizes = [1, 8, 8], strides = [1, 1, 1]} : vector<1x8x32xf32> to vector<1x8x8xf32>
    %76 = vector.extract_strided_slice %10 {offsets = [0, 0, 16], sizes = [1, 8, 8], strides = [1, 1, 1]} : vector<1x8x32xf32> to vector<1x8x8xf32>
    "tpu.trace_start"() <{level = 10 : i32, message = "bqd,bkd->bqk"}> : () -> ()
    %cst_33 = arith.constant dense<0.000000e+00> : vector<1x4x8xf32>
    %77 = tpu.matmul %74, %75, %cst_33 {dimension_numbers = #tpu.dot_dimension_numbers<[2], [2], [1], [1], [0, 0, 0, 1, 1, 1], [0], [0]>} : vector<1x4x8xf32>, vector<1x8x8xf32>, vector<1x4x8xf32> -> vector<1x4x8xf32>
    %cst_34 = arith.constant -1.000000e+30 : f32
    "tpu.trace_stop"() : () -> ()
    %78 = vector.broadcast %cst_34 : f32 to vector<1x4x8xf32>
    %79 = arith.select %31, %78, %77 : vector<1x4x8xi1>, vector<1x4x8xf32>
    %cst_35 = arith.constant dense<0xFF800000> : vector<1x4xf32>
    %80 = vector.multi_reduction <maximumf>, %79, %cst_35 [2] : vector<1x4x8xf32> to vector<1x4xf32>
    %81 = vector.shape_cast %80 : vector<1x4xf32> to vector<1x4x1xf32>
    %82 = vector.broadcast %81 : vector<1x4x1xf32> to vector<1x4x8xf32>
    %83 = arith.subf %79, %82 : vector<1x4x8xf32>
    %84 = math.exp %83 : vector<1x4x8xf32>
    %cst_36 = arith.constant dense<0.000000e+00> : vector<1x4xf32>
    %85 = vector.multi_reduction <add>, %84, %cst_36 [2] : vector<1x4x8xf32> to vector<1x4xf32>
    %86 = vector.shape_cast %85 : vector<1x4xf32> to vector<1x4x1xf32>
    %87 = vector.broadcast %86 : vector<1x4x1xf32> to vector<1x4x8xf32>
    %88 = arith.divf %84, %87 : vector<1x4x8xf32>
    %89 = arith.addf %67, %88 : vector<1x4x8xf32>
    "tpu.trace_start"() <{level = 10 : i32, message = "bqk,bkd->bqd"}> : () -> ()
    %cst_37 = arith.constant dense<0.000000e+00> : vector<1x4x8xf32>
    %90 = tpu.matmul %88, %76, %cst_37 {dimension_numbers = #tpu.dot_dimension_numbers<[2], [1], [1], [2], [0, 0, 0, 1, 1, 2], [0], [0]>} : vector<1x4x8xf32>, vector<1x8x8xf32>, vector<1x4x8xf32> -> vector<1x4x8xf32>
    "tpu.trace_stop"() : () -> ()
    %91 = vector.shape_cast %90 : vector<1x4x8xf32> to vector<4x8xf32>
    %c16 = arith.constant 16 : index
    %c0_38 = arith.constant 0 : index
    %92 = vector.load %arg8[%c16, %c0_38] : memref<32x32xf32, #tpu.memory_space<vmem>>, vector<8x32xf32>
    %cst_39 = arith.constant dense<0.000000e+00> : vector<4x32xf32>
    %93 = tpu.matmul %91, %92, %cst_39 {dimension_numbers = #tpu.dot_dimension_numbers<[1], [0], [0], [1], [0, 0, 1, 1], [], []>} : vector<4x8xf32>, vector<8x32xf32>, vector<4x32xf32> -> vector<4x32xf32>
    %94 = vector.shape_cast %93 : vector<4x32xf32> to vector<1x4x32xf32>
    %95 = arith.addf %73, %94 : vector<1x4x32xf32>
    %96 = vector.extract_strided_slice %17 {offsets = [0, 0, 24], sizes = [1, 4, 8], strides = [1, 1, 1]} : vector<1x4x32xf32> to vector<1x4x8xf32>
    %97 = vector.extract_strided_slice %9 {offsets = [0, 0, 24], sizes = [1, 8, 8], strides = [1, 1, 1]} : vector<1x8x32xf32> to vector<1x8x8xf32>
    %98 = vector.extract_strided_slice %10 {offsets = [0, 0, 24], sizes = [1, 8, 8], strides = [1, 1, 1]} : vector<1x8x32xf32> to vector<1x8x8xf32>
    "tpu.trace_start"() <{level = 10 : i32, message = "bqd,bkd->bqk"}> : () -> ()
    %cst_40 = arith.constant dense<0.000000e+00> : vector<1x4x8xf32>
    %99 = tpu.matmul %96, %97, %cst_40 {dimension_numbers = #tpu.dot_dimension_numbers<[2], [2], [1], [1], [0, 0, 0, 1, 1, 1], [0], [0]>} : vector<1x4x8xf32>, vector<1x8x8xf32>, vector<1x4x8xf32> -> vector<1x4x8xf32>
    %cst_41 = arith.constant -1.000000e+30 : f32
    "tpu.trace_stop"() : () -> ()
    %100 = vector.broadcast %cst_41 : f32 to vector<1x4x8xf32>
    %101 = arith.select %31, %100, %99 : vector<1x4x8xi1>, vector<1x4x8xf32>
    %cst_42 = arith.constant dense<0xFF800000> : vector<1x4xf32>
    %102 = vector.multi_reduction <maximumf>, %101, %cst_42 [2] : vector<1x4x8xf32> to vector<1x4xf32>
    %103 = vector.shape_cast %102 : vector<1x4xf32> to vector<1x4x1xf32>
    %104 = vector.broadcast %103 : vector<1x4x1xf32> to vector<1x4x8xf32>
    %105 = arith.subf %101, %104 : vector<1x4x8xf32>
    %106 = math.exp %105 : vector<1x4x8xf32>
    %cst_43 = arith.constant dense<0.000000e+00> : vector<1x4xf32>
    %107 = vector.multi_reduction <add>, %106, %cst_43 [2] : vector<1x4x8xf32> to vector<1x4xf32>
    %108 = vector.shape_cast %107 : vector<1x4xf32> to vector<1x4x1xf32>
    %109 = vector.broadcast %108 : vector<1x4x1xf32> to vector<1x4x8xf32>
    %110 = arith.divf %106, %109 : vector<1x4x8xf32>
    %111 = arith.addf %89, %110 : vector<1x4x8xf32>
    "tpu.trace_start"() <{level = 10 : i32, message = "bqk,bkd->bqd"}> : () -> ()
    %cst_44 = arith.constant dense<0.000000e+00> : vector<1x4x8xf32>
    %112 = tpu.matmul %110, %98, %cst_44 {dimension_numbers = #tpu.dot_dimension_numbers<[2], [1], [1], [2], [0, 0, 0, 1, 1, 2], [0], [0]>} : vector<1x4x8xf32>, vector<1x8x8xf32>, vector<1x4x8xf32> -> vector<1x4x8xf32>
    "tpu.trace_stop"() : () -> ()
    %113 = vector.shape_cast %112 : vector<1x4x8xf32> to vector<4x8xf32>
    %c24 = arith.constant 24 : index
    %c0_45 = arith.constant 0 : index
    %114 = vector.load %arg8[%c24, %c0_45] : memref<32x32xf32, #tpu.memory_space<vmem>>, vector<8x32xf32>
    %cst_46 = arith.constant dense<0.000000e+00> : vector<4x32xf32>
    %115 = tpu.matmul %113, %114, %cst_46 {dimension_numbers = #tpu.dot_dimension_numbers<[1], [0], [0], [1], [0, 0, 1, 1], [], []>} : vector<4x8xf32>, vector<8x32xf32>, vector<4x32xf32> -> vector<4x32xf32>
    %116 = vector.shape_cast %115 : vector<4x32xf32> to vector<1x4x32xf32>
    %117 = arith.addf %95, %116 : vector<1x4x32xf32>
    %c0_47 = arith.constant 0 : index
    %c0_48 = arith.constant 0 : index
    %118 = vector.load %arg9[%c0_47, %c0_48] : memref<1x32xf32, #tpu.memory_space<vmem>>, vector<1x32xf32>
    %119 = vector.shape_cast %118 : vector<1x32xf32> to vector<1x1x32xf32>
    %120 = vector.broadcast %119 : vector<1x1x32xf32> to vector<1x4x32xf32>
    %121 = arith.addf %117, %120 : vector<1x4x32xf32>
    %122 = arith.addf %121, %1 : vector<1x4x32xf32>
    %c0_49 = arith.constant 0 : index
    %c0_50 = arith.constant 0 : index
    %c0_51 = arith.constant 0 : index
    %123 = vector.load %arg10[%c0_49, %c0_50, %c0_51] : memref<1x4x32xf32, #tpu.memory_space<vmem>>, vector<1x4x32xf32>
    tpu.vector_store %arg10[%c0_49, %c0_50, %c0_51], %122 {strides = array<i32>} : memref<1x4x32xf32, #tpu.memory_space<vmem>>, vector<1x4x32xf32>,
    %cst_52 = arith.constant 2.500000e-01 : f32
    %124 = vector.broadcast %cst_52 : f32 to vector<1x4x8xf32>
    %125 = arith.mulf %111, %124 : vector<1x4x8xf32>
    %c0_53 = arith.constant 0 : index
    %c0_54 = arith.constant 0 : index
    %c0_55 = arith.constant 0 : index
    %126 = vector.load %arg11[%c0_53, %c0_54, %c0_55] : memref<1x4x8xf32, #tpu.memory_space<vmem>>, vector<1x4x8xf32>
    tpu.vector_store %arg11[%c0_53, %c0_54, %c0_55], %125 {strides = array<i32>} : memref<1x4x8xf32, #tpu.memory_space<vmem>>, vector<1x4x8xf32>,
    return
  }
  func.func @transform_0(%arg0: i32) -> (i32, i32, i32) {
    %c0_i32 = arith.constant 0 : i32
    %c0_i32_0 = arith.constant 0 : i32
    %c0_i32_1 = arith.constant 0 : i32
    return %arg0, %c0_i32, %c0_i32_0 : i32, i32, i32
  }
  func.func @transform_1(%arg0: i32) -> (i32, i32, i32) {
    %c0_i32 = arith.constant 0 : i32
    %c0_i32_0 = arith.constant 0 : i32
    %c0_i32_1 = arith.constant 0 : i32
    return %arg0, %c0_i32, %c0_i32_0 : i32, i32, i32
  }
  func.func @transform_2(%arg0: i32) -> (i32, i32, i32) {
    %c0_i32 = arith.constant 0 : i32
    %c0_i32_0 = arith.constant 0 : i32
    %c0_i32_1 = arith.constant 0 : i32
    return %arg0, %c0_i32, %c0_i32_0 : i32, i32, i32
  }
  func.func @transform_3(%arg0: i32) -> (i32, i32) {
    %c0_i32 = arith.constant 0 : i32
    %c0_i32_0 = arith.constant 0 : i32
    %c0_i32_1 = arith.constant 0 : i32
    return %c0_i32, %c0_i32_0 : i32, i32
  }
  func.func @transform_4(%arg0: i32) -> (i32, i32) {
    %c0_i32 = arith.constant 0 : i32
    %c0_i32_0 = arith.constant 0 : i32
    %c0_i32_1 = arith.constant 0 : i32
    return %c0_i32, %c0_i32_0 : i32, i32
  }
  func.func @transform_5(%arg0: i32) -> (i32, i32) {
    %c0_i32 = arith.constant 0 : i32
    %c0_i32_0 = arith.constant 0 : i32
    %c0_i32_1 = arith.constant 0 : i32
    return %c0_i32, %c0_i32_0 : i32, i32
  }
  func.func @transform_6(%arg0: i32) -> (i32, i32) {
    %c0_i32 = arith.constant 0 : i32
    %c0_i32_0 = arith.constant 0 : i32
    %c0_i32_1 = arith.constant 0 : i32
    return %c0_i32, %c0_i32_0 : i32, i32
  }
  func.func @transform_7(%arg0: i32) -> (i32, i32) {
    %c0_i32 = arith.constant 0 : i32
    %c0_i32_0 = arith.constant 0 : i32
    %c0_i32_1 = arith.constant 0 : i32
    return %c0_i32, %c0_i32_0 : i32, i32
  }
  func.func @transform_8(%arg0: i32) -> (i32, i32) {
    %c0_i32 = arith.constant 0 : i32
    %c0_i32_0 = arith.constant 0 : i32
    %c0_i32_1 = arith.constant 0 : i32
    return %c0_i32, %c0_i32_0 : i32, i32
  }
  func.func @transform_9(%arg0: i32) -> (i32, i32, i32) {
    %c0_i32 = arith.constant 0 : i32
    %c0_i32_0 = arith.constant 0 : i32
    %c0_i32_1 = arith.constant 0 : i32
    return %arg0, %c0_i32, %c0_i32_0 : i32, i32, i32
  }
  func.func @transform_10(%arg0: i32) -> (i32, i32, i32) {
    %c0_i32 = arith.constant 0 : i32
    %c0_i32_0 = arith.constant 0 : i32
    %c0_i32_1 = arith.constant 0 : i32
    return %arg0, %c0_i32, %c0_i32_0 : i32, i32, i32
  }
}

</mosaic_0001>

<llo_original>
// kernel: tpu_custom_call.1
$region0: #{tpu_custom_call.1}
  #allocation0 [shape = 'u32[]', space=smem, size = 0x4, offset = 0x4, fixed_abs, tag = 'smem constant byte address 0x4 - core index']
  #allocation1 [shape = 'u32[144,128]{1,0:T(1,128)}', space=vmem, size = 0x12000, scoped, tag = 'internal scratch']
  %s0 = inlined_call_operand.hbm [shape: f32[2,1,8], index: 0, kind: input, shape index: {}]
  %s1 = inlined_call_operand.hbm [shape: f32[2,4,32], index: 1, kind: input, shape index: {}]
  %s2 = inlined_call_operand.hbm [shape: f32[2,8,32], index: 2, kind: input, shape index: {}]
  %s3 = inlined_call_operand.hbm [shape: f32[32,32], index: 3, kind: input, shape index: {}]
  %s4 = inlined_call_operand.vmem [shape: f32[1,32], index: 4, kind: input, shape index: {}]
  %s5 = inlined_call_operand.hbm [shape: f32[32,64], index: 5, kind: input, shape index: {}]
  %s6 = inlined_call_operand.vmem [shape: f32[1,64], index: 6, kind: input, shape index: {}]
  %s7 = inlined_call_operand.hbm [shape: f32[32,32], index: 7, kind: input, shape index: {}]
  %s8 = inlined_call_operand.vmem [shape: f32[1,32], index: 8, kind: input, shape index: {}]
  %s9 = inlined_call_operand.hbm [shape: f32[2,4,32], index: 9, kind: output, shape index: {0}]
  %s10 = inlined_call_operand.hbm [shape: f32[2,4,8], index: 10, kind: output, shape index: {1}]
  %11 = xla_tuple %s9, %s10
  %s12 = sld [smem:[#allocation0]]
  $region101: #{tpu_custom_call.1} parent=0
    _
  %s14 = ssub.s32 1, %s12
  %s15 = scalar_select 0, %s14, %s12
  $region1: #{tpu_custom_call.1} parent=0
    #allocation2 [shape = 'u8[1024]{0}', space=vmem, size = 0x400, scoped, tag = 'input window, operand 0']
    #allocation3 [shape = 's32[2]{0}', space=sflag, size = 0x8, scoped, tag = 'scoped memory for tpu_custom_call.1']
    #allocation4 [shape = 's32[2]{0}', space=sflag, size = 0x8, scoped, tag = 'scoped memory for tpu_custom_call.1']
    #allocation5 [shape = 'u8[4096]{0}', space=vmem, size = 0x1000, scoped, tag = 'input window, operand 1']
    #allocation6 [shape = 's32[2]{0}', space=sflag, size = 0x8, scoped, tag = 'scoped memory for tpu_custom_call.1']
    #allocation7 [shape = 'u8[8192]{0}', space=vmem, size = 0x2000, scoped, tag = 'input window, operand 2']
    #allocation8 [shape = 'u8[16384]{0}', space=vmem, size = 0x4000, scoped, tag = 'input window, operand 3, single buffered']
    #allocation9 [shape = 's32[1]{0}', space=sflag, size = 0x4, scoped, tag = 'scoped memory for tpu_custom_call.1']
    #allocation10 [shape = 'u8[16384]{0}', space=vmem, size = 0x4000, scoped, tag = 'input window, operand 5, single buffered']
    #allocation11 [shape = 'u8[16384]{0}', space=vmem, size = 0x4000, scoped, tag = 'input window, operand 7, single buffered']
    #allocation12 [shape = 's32[1]{0}', space=sflag, size = 0x4, scoped, tag = 'scoped memory for tpu_custom_call.1']
    #allocation13 [shape = 'u8[4096]{0}', space=vmem, size = 0x1000, scoped, tag = 'output window, operand 0']
    #allocation14 [shape = 'u8[4096]{0}', space=vmem, size = 0x1000, scoped, tag = 'output window, operand 1']
    #allocation15 [shape = 's32[2]{0}', space=sflag, size = 0x8, scoped, tag = 'scoped memory for tpu_custom_call.1']
    %16 = vsyncpa [#allocation3], 0
    %s17 = scalar_lea.sflag [#allocation3], 1
    %18 = vsyncpa %s17, 0
    %19 = vsyncpa [#allocation6], 0
    %s20 = scalar_lea.sflag [#allocation6], 1
    %21 = vsyncpa %s20, 0
    %22 = vsyncpa [#allocation9], 0
    %23 = vsyncpa [#allocation12], 0
    %24 = vsyncpa [#allocation4], 0
    %s25 = scalar_lea.sflag [#allocation4], 1
    %26 = vsyncpa %s25, 0
    %27 = vsyncpa [#allocation15], 0
    %s28 = scalar_lea.sflag [#allocation15], 1
    %29 = vsyncpa %s28, 0
    loop: start=0, step=1, limit=4
    $region2: #{tpu_custom_call.1} parent=1 // loop_pre_header
      _
    $region3: #{tpu_custom_call.1} parent=1 // loop_header
      %s31 = sphi 0, %s35
      %p32 = scmp.ge.s32.totalorder %s31, 4
      %s41 = sphi 0, %s43
      %s44 = sphi 0, %s41
      %s45 = sphi 0, %s44
      %s61 = sphi 0, %s45
      %s67 = sphi 0, %s69
      %s70 = sphi 0, %s67
      %s71 = sphi 0, %s70
      %s87 = sphi 0, %s71
      %s93 = sphi 0, %s95
      %s96 = sphi 0, %s93
      %s97 = sphi 0, %s96
      %s113 = sphi 0, %s97
      %s117 = sphi 0, %s117
      %s119 = sphi 0, %s117
      %s120 = sphi 0, %s119
      %s134 = sphi 0, %s120
      %s138 = sphi 0, %s138
      %s140 = sphi 0, %s138
      %s141 = sphi 0, %s140
      %s155 = sphi 0, %s141
      %s159 = sphi 0, %s159
      %s161 = sphi 0, %s159
      %s162 = sphi 0, %s161
      %s176 = sphi 0, %s162
      %s180 = sphi 0, %s180
      %s182 = sphi 0, %s180
      %s183 = sphi 0, %s182
      %s197 = sphi 0, %s183
      %s201 = sphi 0, %s201
      %s203 = sphi 0, %s201
      %s204 = sphi 0, %s203
      %s218 = sphi 0, %s204
      %s222 = sphi 0, %s222
      %s224 = sphi 0, %s222
      %s225 = sphi 0, %s224
      %s239 = sphi 0, %s225
      %s245 = sphi 0, %s247
      %s248 = sphi 0, %s245
      %s249 = sphi 0, %s248
      %s265 = sphi 0, %s249
      %s271 = sphi 0, %s273
      %s274 = sphi 0, %s271
      %s275 = sphi 0, %s274
      %s291 = sphi 0, %s275
    $region4: #{tpu_custom_call.1} parent=1 // loop_header_branch
      %34 = sbr.rel (%p32) target = $region8
    $region5: #{tpu_custom_call.1} parent=1 // loop_body
      %s36 = ssub.s32 %s31, 1
      %s37 = ssub.s32 %s31, 2
      %s38 = sadd.s32 %s31, 1
      %s39 = ssub.s32 %s31, %s38
      %p40 = scmp.eq.s32.totalorder %s39, 0
      %s42 = sadd.s32 %s41, 1
      %s43 = scalar_select %p40, %s41, %s42
      %p46 = pneg %p40
      %p47 = scmp.eq.s32.totalorder %s31, 1
      %p48 = por %p46, %p47
      %p49 = scmp.ne.s32.totalorder %s41, %s44
      %p50 = scmp.eq.s32.totalorder %s31, 0
      %p51 = por %p49, %p50
      %p52 = scmp.ne.s32.totalorder %s41, %s44
      %p53 = scmp.eq.s32.totalorder %s36, 1
      %p54 = por %p52, %p53
      %p55 = scmp.ne.s32.totalorder %s44, %s45
      %p56 = scmp.eq.s32.totalorder %s36, 0
      %p57 = por %p55, %p56
      %p58 = scmp.ne.s32.totalorder %s44, %s45
      %p59 = scmp.eq.s32.totalorder %s37, 1
      %p60 = por %p58, %p59
      %p62 = scmp.ne.s32.totalorder %s45, %s61
      %p63 = scmp.eq.s32.totalorder %s37, 0
      %p64 = por %p62, %p63
      %s65 = ssub.s32 %s31, %s38
      %p66 = scmp.eq.s32.totalorder %s65, 0
      %s68 = sadd.s32 %s67, 1
      %s69 = scalar_select %p66, %s67, %s68
      %p72 = pneg %p66
      %p73 = scmp.eq.s32.totalorder %s31, 1
      %p74 = por %p72, %p73
      %p75 = scmp.ne.s32.totalorder %s67, %s70
      %p76 = scmp.eq.s32.totalorder %s31, 0
      %p77 = por %p75, %p76
      %p78 = scmp.ne.s32.totalorder %s67, %s70
      %p79 = scmp.eq.s32.totalorder %s36, 1
      %p80 = por %p78, %p79
      %p81 = scmp.ne.s32.totalorder %s70, %s71
      %p82 = scmp.eq.s32.totalorder %s36, 0
      %p83 = por %p81, %p82
      %p84 = scmp.ne.s32.totalorder %s70, %s71
      %p85 = scmp.eq.s32.totalorder %s37, 1
      %p86 = por %p84, %p85
      %p88 = scmp.ne.s32.totalorder %s71, %s87
      %p89 = scmp.eq.s32.totalorder %s37, 0
      %p90 = por %p88, %p89
      %s91 = ssub.s32 %s31, %s38
      %p92 = scmp.eq.s32.totalorder %s91, 0
      %s94 = sadd.s32 %s93, 1
      %s95 = scalar_select %p92, %s93, %s94
      %p98 = pneg %p92
      %p99 = scmp.eq.s32.totalorder %s31, 1
      %p100 = por %p98, %p99
      %p101 = scmp.ne.s32.totalorder %s93, %s96
      %p102 = scmp.eq.s32.totalorder %s31, 0
      %p103 = por %p101, %p102
      %p104 = scmp.ne.s32.totalorder %s93, %s96
      %p105 = scmp.eq.s32.totalorder %s36, 1
      %p106 = por %p104, %p105
      %p107 = scmp.ne.s32.totalorder %s96, %s97
      %p108 = scmp.eq.s32.totalorder %s36, 0
      %p109 = por %p107, %p108
      %p110 = scmp.ne.s32.totalorder %s96, %s97
      %p111 = scmp.eq.s32.totalorder %s37, 1
      %p112 = por %p110, %p111
      %p114 = scmp.ne.s32.totalorder %s97, %s113
      %p115 = scmp.eq.s32.totalorder %s37, 0
      %p116 = por %p114, %p115
      %s118 = sadd.s32 %s117, 1
      %p121 = scmp.eq.s32.totalorder %s31, 1
      %p122 = scmp.ne.s32.totalorder %s117, %s119
      %p123 = scmp.eq.s32.totalorder %s31, 0
      %p124 = por %p122, %p123
      %p125 = scmp.ne.s32.totalorder %s117, %s119
      %p126 = scmp.eq.s32.totalorder %s36, 1
      %p127 = por %p125, %p126
      %p128 = scmp.ne.s32.totalorder %s119, %s120
      %p129 = scmp.eq.s32.totalorder %s36, 0
      %p130 = por %p128, %p129
      %p131 = scmp.ne.s32.totalorder %s119, %s120
      %p132 = scmp.eq.s32.totalorder %s37, 1
      %p133 = por %p131, %p132
      %p135 = scmp.ne.s32.totalorder %s120, %s134
      %p136 = scmp.eq.s32.totalorder %s37, 0
      %p137 = por %p135, %p136
      %s139 = sadd.s32 %s138, 1
      %p142 = scmp.eq.s32.totalorder %s31, 1
      %p143 = scmp.ne.s32.totalorder %s138, %s140
      %p144 = scmp.eq.s32.totalorder %s31, 0
      %p145 = por %p143, %p144
      %p146 = scmp.ne.s32.totalorder %s138, %s140
      %p147 = scmp.eq.s32.totalorder %s36, 1
      %p148 = por %p146, %p147
      %p149 = scmp.ne.s32.totalorder %s140, %s141
      %p150 = scmp.eq.s32.totalorder %s36, 0
      %p151 = por %p149, %p150
      %p152 = scmp.ne.s32.totalorder %s140, %s141
      %p153 = scmp.eq.s32.totalorder %s37, 1
      %p154 = por %p152, %p153
      %p156 = scmp.ne.s32.totalorder %s141, %s155
      %p157 = scmp.eq.s32.totalorder %s37, 0
      %p158 = por %p156, %p157
      %s160 = sadd.s32 %s159, 1
      %p163 = scmp.eq.s32.totalorder %s31, 1
      %p164 = scmp.ne.s32.totalorder %s159, %s161
      %p165 = scmp.eq.s32.totalorder %s31, 0
      %p166 = por %p164, %p165
      %p167 = scmp.ne.s32.totalorder %s159, %s161
      %p168 = scmp.eq.s32.totalorder %s36, 1
      %p169 = por %p167, %p168
      %p170 = scmp.ne.s32.totalorder %s161, %s162
      %p171 = scmp.eq.s32.totalorder %s36, 0
      %p172 = por %p170, %p171
      %p173 = scmp.ne.s32.totalorder %s161, %s162
      %p174 = scmp.eq.s32.totalorder %s37, 1
      %p175 = por %p173, %p174
      %p177 = scmp.ne.s32.totalorder %s162, %s176
      %p178 = scmp.eq.s32.totalorder %s37, 0
      %p179 = por %p177, %p178
      %s181 = sadd.s32 %s180, 1
      %p184 = scmp.eq.s32.totalorder %s31, 1
      %p185 = scmp.ne.s32.totalorder %s180, %s182
      %p186 = scmp.eq.s32.totalorder %s31, 0
      %p187 = por %p185, %p186
      %p188 = scmp.ne.s32.totalorder %s180, %s182
      %p189 = scmp.eq.s32.totalorder %s36, 1
      %p190 = por %p188, %p189
      %p191 = scmp.ne.s32.totalorder %s182, %s183
      %p192 = scmp.eq.s32.totalorder %s36, 0
      %p193 = por %p191, %p192
      %p194 = scmp.ne.s32.totalorder %s182, %s183
      %p195 = scmp.eq.s32.totalorder %s37, 1
      %p196 = por %p194, %p195
      %p198 = scmp.ne.s32.totalorder %s183, %s197
      %p199 = scmp.eq.s32.totalorder %s37, 0
      %p200 = por %p198, %p199
      %s202 = sadd.s32 %s201, 1
      %p205 = scmp.eq.s32.totalorder %s31, 1
      %p206 = scmp.ne.s32.totalorder %s201, %s203
      %p207 = scmp.eq.s32.totalorder %s31, 0
      %p208 = por %p206, %p207
      %p209 = scmp.ne.s32.totalorder %s201, %s203
      %p210 = scmp.eq.s32.totalorder %s36, 1
      %p211 = por %p209, %p210
      %p212 = scmp.ne.s32.totalorder %s203, %s204
      %p213 = scmp.eq.s32.totalorder %s36, 0
      %p214 = por %p212, %p213
      %p215 = scmp.ne.s32.totalorder %s203, %s204
      %p216 = scmp.eq.s32.totalorder %s37, 1
      %p217 = por %p215, %p216
      %p219 = scmp.ne.s32.totalorder %s204, %s218
      %p220 = scmp.eq.s32.totalorder %s37, 0
      %p221 = por %p219, %p220
      %s223 = sadd.s32 %s222, 1
      %p226 = scmp.eq.s32.totalorder %s31, 1
      %p227 = scmp.ne.s32.totalorder %s222, %s224
      %p228 = scmp.eq.s32.totalorder %s31, 0
      %p229 = por %p227, %p228
      %p230 = scmp.ne.s32.totalorder %s222, %s224
      %p231 = scmp.eq.s32.totalorder %s36, 1
      %p232 = por %p230, %p231
      %p233 = scmp.ne.s32.totalorder %s224, %s225
      %p234 = scmp.eq.s32.totalorder %s36, 0
      %p235 = por %p233, %p234
      %p236 = scmp.ne.s32.totalorder %s224, %s225
      %p237 = scmp.eq.s32.totalorder %s37, 1
      %p238 = por %p236, %p237
      %p240 = scmp.ne.s32.totalorder %s225, %s239
      %p241 = scmp.eq.s32.totalorder %s37, 0
      %p242 = por %p240, %p241
      %s243 = ssub.s32 %s31, %s38
      %p244 = scmp.eq.s32.totalorder %s243, 0
      %s246 = sadd.s32 %s245, 1
      %s247 = scalar_select %p244, %s245, %s246
      %p250 = pneg %p244
      %p251 = scmp.eq.s32.totalorder %s31, 1
      %p252 = por %p250, %p251
      %p253 = scmp.ne.s32.totalorder %s245, %s248
      %p254 = scmp.eq.s32.totalorder %s31, 0
      %p255 = por %p253, %p254
      %p256 = scmp.ne.s32.totalorder %s245, %s248
      %p257 = scmp.eq.s32.totalorder %s36, 1
      %p258 = por %p256, %p257
      %p259 = scmp.ne.s32.totalorder %s248, %s249
      %p260 = scmp.eq.s32.totalorder %s36, 0
      %p261 = por %p259, %p260
      %p262 = scmp.ne.s32.totalorder %s248, %s249
      %p263 = scmp.eq.s32.totalorder %s37, 1
      %p264 = por %p262, %p263
      %p266 = scmp.ne.s32.totalorder %s249, %s265
      %p267 = scmp.eq.s32.totalorder %s37, 0
      %p268 = por %p266, %p267
      %s269 = ssub.s32 %s31, %s38
      %p270 = scmp.eq.s32.totalorder %s269, 0
      %s272 = sadd.s32 %s271, 1
      %s273 = scalar_select %p270, %s271, %s272
      %p276 = pneg %p270
      %p277 = scmp.eq.s32.totalorder %s31, 1
      %p278 = por %p276, %p277
      %p279 = scmp.ne.s32.totalorder %s271, %s274
      %p280 = scmp.eq.s32.totalorder %s31, 0
      %p281 = por %p279, %p280
      %p282 = scmp.ne.s32.totalorder %s271, %s274
      %p283 = scmp.eq.s32.totalorder %s36, 1
      %p284 = por %p282, %p283
      %p285 = scmp.ne.s32.totalorder %s274, %s275
      %p286 = scmp.eq.s32.totalorder %s36, 0
      %p287 = por %p285, %p286
      %p288 = scmp.ne.s32.totalorder %s274, %s275
      %p289 = scmp.eq.s32.totalorder %s37, 1
      %p290 = por %p288, %p289
      %p292 = scmp.ne.s32.totalorder %s275, %s291
      %p293 = scmp.eq.s32.totalorder %s37, 0
      %p294 = por %p292, %p293
      %p295 = scmp.le.s32.totalorder 1, %s31
      %p296 = scmp.lt.s32.totalorder %s31, 3
      %p297 = pnand %p295, %p296
      %p298 = pneg %p297
      // Predicated region
      $region9: #{tpu_custom_call.1} parent=5 // pred_check
        _
      $region10: #{tpu_custom_call.1} parent=5 // pred_check_branch
        %300 = sbr.rel (%p297) target = $region12
      $region11: #{tpu_custom_call.1} parent=5 // pred_region
        %s301 = ssub.s32 %s31, 1
        // Predicated region
        $region13: #{tpu_custom_call.1} parent=11 // pred_check
          %p302 = pneg %p130
        $region14: #{tpu_custom_call.1} parent=11 // pred_check_branch
          %304 = sbr.rel (%p302) target = $region16
        $region15: #{tpu_custom_call.1} parent=11 // pred_region
          %s306 = ssub.s32 512, 512
          %307 = vsyncadd [#allocation9], %s306
          %s308 = sshll.u32 [#allocation8], 4
          %s309 = int_to_ptr.vmem [resolvable:$true] %s308
          %314 = dma.hbm_to_vmem [thread:$0]  %s3, 512, %s309, [#allocation9], 128, 128, 8
        $region16: #{tpu_custom_call.1} parent=11 // pred_fallthru
          _
        // Predicated region
        $region17: #{tpu_custom_call.1} parent=11 // pred_check
          %p315 = pneg %p151
        $region18: #{tpu_custom_call.1} parent=11 // pred_check_branch
          %317 = sbr.rel (%p315) target = $region20
        $region19: #{tpu_custom_call.1} parent=11 // pred_region
          _
        $region20: #{tpu_custom_call.1} parent=11 // pred_fallthru
          _
        // Predicated region
        $region21: #{tpu_custom_call.1} parent=11 // pred_check
          %p318 = pneg %p172
        $region22: #{tpu_custom_call.1} parent=11 // pred_check_branch
          %320 = sbr.rel (%p318) target = $region24
        $region23: #{tpu_custom_call.1} parent=11 // pred_region
          %s322 = ssub.s32 512, 512
          %323 = vsyncadd [#allocation9], %s322
          %s324 = sshll.u32 [#allocation10], 4
          %s325 = int_to_ptr.vmem [resolvable:$true] %s324
          %330 = dma.hbm_to_vmem [thread:$0]  %s5, 512, %s325, [#allocation9], 128, 128, 8
        $region24: #{tpu_custom_call.1} parent=11 // pred_fallthru
          _
        // Predicated region
        $region25: #{tpu_custom_call.1} parent=11 // pred_check
          %p331 = pneg %p193
        $region26: #{tpu_custom_call.1} parent=11 // pred_check_branch
          %333 = sbr.rel (%p331) target = $region28
        $region27: #{tpu_custom_call.1} parent=11 // pred_region
          _
        $region28: #{tpu_custom_call.1} parent=11 // pred_fallthru
          _
        // Predicated region
        $region29: #{tpu_custom_call.1} parent=11 // pred_check
          %p334 = pneg %p214
        $region30: #{tpu_custom_call.1} parent=11 // pred_check_branch
          %336 = sbr.rel (%p334) target = $region32
        $region31: #{tpu_custom_call.1} parent=11 // pred_region
          %s338 = ssub.s32 512, 512
          %339 = vsyncadd [#allocation12], %s338
          %s340 = sshll.u32 [#allocation11], 4
          %s341 = int_to_ptr.vmem [resolvable:$true] %s340
          %346 = dma.hbm_to_vmem [thread:$0]  %s7, 512, %s341, [#allocation12], 128, 128, 8
        $region32: #{tpu_custom_call.1} parent=11 // pred_fallthru
          _
        // Predicated region
        $region33: #{tpu_custom_call.1} parent=11 // pred_check
          %p347 = pneg %p235
        $region34: #{tpu_custom_call.1} parent=11 // pred_check_branch
          %349 = sbr.rel (%p347) target = $region36
        $region35: #{tpu_custom_call.1} parent=11 // pred_region
          _
        $region36: #{tpu_custom_call.1} parent=11 // pred_fallthru
          _
      $region12: #{tpu_custom_call.1} parent=5 // pred_fallthru
        _
      %p350 = scmp.lt.s32.totalorder %s31, 2
      // Predicated region
      $region37: #{tpu_custom_call.1} parent=5 // pred_check
        %p351 = pneg %p350
      $region38: #{tpu_custom_call.1} parent=5 // pred_check_branch
        %353 = sbr.rel (%p351) target = $region40
      $region39: #{tpu_custom_call.1} parent=5 // pred_region
        // Predicated region
        $region41: #{tpu_custom_call.1} parent=39 // pred_check
          %p354 = pneg %p51
        $region42: #{tpu_custom_call.1} parent=39 // pred_check_branch
          %356 = sbr.rel (%p354) target = $region44
        $region43: #{tpu_custom_call.1} parent=39 // pred_region
          %s357 = sand.u32 %s41, 1
          %s358 = scalar_lea.sflag [#allocation3], %s357
          %s359 = sand.u32 %s41, 1
          %s360 = scalar_lea.vmem [#allocation2], %s359
          %s362 = ssub.s32 16, 16
          %363 = vsyncadd %s358, %s362
          %s364 = smul.addr %s31, 16
          %s365 = scalar_lea.hbm %s0, %s364
          %s367 = sshll.u32 %s360, 4
          %s368 = int_to_ptr.vmem [resolvable:$true] %s367
          %370 = dma.hbm_to_vmem [thread:$0]  %s365, 16, %s368, %s358
        $region44: #{tpu_custom_call.1} parent=39 // pred_fallthru
          _
        // Predicated region
        $region45: #{tpu_custom_call.1} parent=39 // pred_check
          %p371 = pneg %p77
        $region46: #{tpu_custom_call.1} parent=39 // pred_check_branch
          %373 = sbr.rel (%p371) target = $region48
        $region47: #{tpu_custom_call.1} parent=39 // pred_region
          %s374 = sand.u32 %s31, 1
          %s375 = scalar_lea.sflag [#allocation6], %s374
          %s376 = sand.u32 %s67, 1
          %s377 = smul.addr %s376, 4
          %s378 = scalar_lea.vmem [#allocation5], %s377
          %s380 = ssub.s32 64, 64
          %381 = vsyncadd %s375, %s380
          %s382 = smul.addr %s31, 64
          %s383 = scalar_lea.hbm %s1, %s382
          %s385 = sshll.u32 %s378, 4
          %s386 = int_to_ptr.vmem [resolvable:$true] %s385
          %388 = dma.hbm_to_vmem [thread:$0]  %s383, 64, %s386, %s375
        $region48: #{tpu_custom_call.1} parent=39 // pred_fallthru
          _
        // Predicated region
        $region49: #{tpu_custom_call.1} parent=39 // pred_check
          %p389 = pneg %p103
        $region50: #{tpu_custom_call.1} parent=39 // pred_check_branch
          %391 = sbr.rel (%p389) target = $region52
        $region51: #{tpu_custom_call.1} parent=39 // pred_region
          %s392 = sand.u32 %s31, 1
          %s393 = scalar_lea.sflag [#allocation6], %s392
          %s394 = sand.u32 %s93, 1
          %s395 = smul.addr %s394, 8
          %s396 = scalar_lea.vmem [#allocation7], %s395
          %s398 = ssub.s32 128, 128
          %399 = vsyncadd %s393, %s398
          %s400 = smul.addr %s31, 128
          %s401 = scalar_lea.hbm %s2, %s400
          %s403 = sshll.u32 %s396, 4
          %s404 = int_to_ptr.vmem [resolvable:$true] %s403
          %406 = dma.hbm_to_vmem [thread:$0]  %s401, 128, %s404, %s393
        $region52: #{tpu_custom_call.1} parent=39 // pred_fallthru
          _
      $region40: #{tpu_custom_call.1} parent=5 // pred_fallthru
        _
      %p407 = scmp.le.s32.totalorder 1, %s31
      %p408 = scmp.lt.s32.totalorder %s31, 3
      %p409 = pnand %p407, %p408
      %p410 = pneg %p409
      // Predicated region
      $region53: #{tpu_custom_call.1} parent=5 // pred_check
        _
      $region54: #{tpu_custom_call.1} parent=5 // pred_check_branch
        %412 = sbr.rel (%p409) target = $region56
      $region55: #{tpu_custom_call.1} parent=5 // pred_region
        %s413 = ssub.s32 %s31, 1
        %s414 = sand.u32 %s44, 1
        %s415 = scalar_lea.sflag [#allocation3], %s414
        %s416 = sand.u32 %s44, 1
        %s417 = scalar_lea.vmem [#allocation2], %s416
        // Predicated region
        $region57: #{tpu_custom_call.1} parent=55 // pred_check
          %p418 = pneg %p57
        $region58: #{tpu_custom_call.1} parent=55 // pred_check_branch
          %420 = sbr.rel (%p418) target = $region60
        $region59: #{tpu_custom_call.1} parent=55 // pred_region
          %421 = dma.done %s415, 16
        $region60: #{tpu_custom_call.1} parent=55 // pred_fallthru
          _
        %s422 = sand.u32 %s36, 1
        %s423 = scalar_lea.sflag [#allocation6], %s422
        %s424 = sand.u32 %s70, 1
        %s425 = smul.addr %s424, 4
        %s426 = scalar_lea.vmem [#allocation5], %s425
        // Predicated region
        $region61: #{tpu_custom_call.1} parent=55 // pred_check
          %p427 = pneg %p83
        $region62: #{tpu_custom_call.1} parent=55 // pred_check_branch
          %429 = sbr.rel (%p427) target = $region64
        $region63: #{tpu_custom_call.1} parent=55 // pred_region
          %430 = dma.done %s423, 64
        $region64: #{tpu_custom_call.1} parent=55 // pred_fallthru
          _
        %s431 = sand.u32 %s36, 1
        %s432 = scalar_lea.sflag [#allocation6], %s431
        %s433 = sand.u32 %s96, 1
        %s434 = smul.addr %s433, 8
        %s435 = scalar_lea.vmem [#allocation7], %s434
        // Predicated region
        $region65: #{tpu_custom_call.1} parent=55 // pred_check
          %p436 = pneg %p109
        $region66: #{tpu_custom_call.1} parent=55 // pred_check_branch
          %438 = sbr.rel (%p436) target = $region68
        $region67: #{tpu_custom_call.1} parent=55 // pred_region
          %439 = dma.done %s432, 128
        $region68: #{tpu_custom_call.1} parent=55 // pred_fallthru
          _
        // Predicated region
        $region69: #{tpu_custom_call.1} parent=55 // pred_check
          %p440 = pneg %p130
        $region70: #{tpu_custom_call.1} parent=55 // pred_check_branch
          %442 = sbr.rel (%p440) target = $region72
        $region71: #{tpu_custom_call.1} parent=55 // pred_region
          %443 = dma.done [#allocation9], 512
        $region72: #{tpu_custom_call.1} parent=55 // pred_fallthru
          _
        // Predicated region
        $region73: #{tpu_custom_call.1} parent=55 // pred_check
          %p444 = pneg %p172
        $region74: #{tpu_custom_call.1} parent=55 // pred_check_branch
          %446 = sbr.rel (%p444) target = $region76
        $region75: #{tpu_custom_call.1} parent=55 // pred_region
          %447 = dma.done [#allocation9], 512
        $region76: #{tpu_custom_call.1} parent=55 // pred_fallthru
          _
        // Predicated region
        $region77: #{tpu_custom_call.1} parent=55 // pred_check
          %p448 = pneg %p214
        $region78: #{tpu_custom_call.1} parent=55 // pred_check_branch
          %450 = sbr.rel (%p448) target = $region80
        $region79: #{tpu_custom_call.1} parent=55 // pred_region
          %451 = dma.done [#allocation12], 512
        $region80: #{tpu_custom_call.1} parent=55 // pred_fallthru
          _
        %s452 = sand.u32 %s44, 1
        %s453 = scalar_lea.sflag [#allocation3], %s452
        %s454 = sand.u32 %s44, 1
        %s455 = scalar_lea.vmem [#allocation2], %s454
        %p456 = pneg %p57
        %p457 = pneg %p54
        %s458 = sand.u32 %s36, 1
        %s459 = scalar_lea.sflag [#allocation6], %s458
        %s460 = sand.u32 %s70, 1
        %s461 = smul.addr %s460, 4
        %s462 = scalar_lea.vmem [#allocation5], %s461
        %p463 = pneg %p83
        %p464 = pneg %p80
        %s465 = sand.u32 %s36, 1
        %s466 = scalar_lea.sflag [#allocation6], %s465
        %s467 = sand.u32 %s96, 1
        %s468 = smul.addr %s467, 8
        %s469 = scalar_lea.vmem [#allocation7], %s468
        %p470 = pneg %p109
        %p471 = pneg %p106
        %p472 = pneg %p130
        %p473 = pneg %p127
        %p474 = pneg %p151
        %p475 = pneg %p148
        %p476 = pneg %p172
        %p477 = pneg %p169
        %p478 = pneg %p193
        %p479 = pneg %p190
        %p480 = pneg %p214
        %p481 = pneg %p211
        %p482 = pneg %p235
        %p483 = pneg %p232
        %p484 = pneg %p261
        %p485 = pneg %p258
        %s486 = sand.u32 %s248, 1
        %s487 = scalar_lea.sflag [#allocation4], %s486
        %s488 = sand.u32 %s248, 1
        %s489 = smul.addr %s488, 4
        %s490 = scalar_lea.vmem [#allocation13], %s489
        %p491 = pneg %p287
        %p492 = pneg %p284
        %s493 = sand.u32 %s274, 1
        %s494 = scalar_lea.sflag [#allocation15], %s493
        %s495 = sand.u32 %s274, 1
        %s496 = smul.addr %s495, 4
        %s497 = scalar_lea.vmem [#allocation14], %s496
        %v498 = vld [vmem:[%s435] sm:$0xff]
        %v499 = vld [vmem:[%s426] sm:$0xf]
        %v500 = vld [vmem:[#allocation10] sm:$0xff]
        %v501 = vld [vmem:[#allocation10 + $0x8] sm:$0xff]
        %v502 = vld [vmem:[#allocation10 + $0x10] sm:$0xff]
        %v503 = vld [vmem:[#allocation10 + $0x18] sm:$0xff]
        %v504 = vld [vmem:[%s6] sm:$0x1]
        %v506 = vlaneseq
        %v507 = vshrl.u32 %v506, 7
        %v508 = vsub.s32 0, %v507
        %v509 = vrot.slane %v504, %v508
        %vm511 = vcmask 261120
        %v513 = vsel %vm511, %v498, 0
        %515 = vmatprep.subr.mxu0 0.0
        %516 = vmatpush1.msra.mxu0 %v500
        %517 = vmatprep.subr.mxu0 0.0
        %518 = vmatpush1.msra.mxu0 %v501
        %519 = vmatprep.subr.mxu0 0.0
        %520 = vmatpush1.msra.mxu0 %v502
        %521 = vmatprep.subr.mxu0 0.0
        %522 = vmatpush1.msra.mxu0 %v503
        %523 = vmatprep.subr.mxu0 0.0
        %524 = vmatpush1.msra.mxu0 0.0
        %525 = vmatprep.subr.mxu0 0.0
        %526 = vmatpush1.msra.mxu0 0.0
        %527 = vmatprep.subr.mxu0 0.0
        %528 = vmatpush1.msra.mxu0 0.0
        %529 = vmatprep.subr.mxu0 0.0
        %530 = vmatpush1.msra.mxu0 0.0
        %531 = vmatprep.subr.mxu0 0.0
        %532 = vmatpush1.msra.mxu0 0.0
        %533 = vmatprep.subr.mxu0 0.0
        %534 = vmatpush1.msra.mxu0 0.0
        %535 = vmatprep.subr.mxu0 0.0
        %536 = vmatpush1.msra.mxu0 0.0
        %537 = vmatprep.subr.mxu0 0.0
        %538 = vmatpush1.msra.mxu0 0.0
        %539 = vmatprep.subr.mxu0 0.0
        %540 = vmatpush1.msra.mxu0 0.0
        %541 = vmatprep.subr.mxu0 0.0
        %542 = vmatpush1.msra.mxu0 0.0
        %543 = vmatprep.subr.mxu0 0.0
        %544 = vmatpush1.msra.mxu0 0.0
        %545 = vmatprep.subr.mxu0 0.0
        %546 = vmatpush1.msra.mxu0 0.0
        %547 = vmatprep.subr.mxu0 0.0
        %548 = vmatpush1.msra.mxu0 0.0
        %549 = vmatprep.subr.mxu0 0.0
        %550 = vmatpush1.msra.mxu0 0.0
        %551 = vmatprep.subr.mxu0 0.0
        %552 = vmatpush1.msra.mxu0 0.0
        %553 = vmatprep.subr.mxu0 0.0
        %554 = vmatpush1.msra.mxu0 0.0
        %555 = vmatprep.subr.mxu0 0.0
        %556 = vmatpush1.msra.mxu0 0.0
        %557 = vmatprep.subr.mxu0 0.0
        %558 = vmatpush1.msra.mxu0 0.0
        %559 = vmatprep.subr.mxu0 0.0
        %560 = vmatpush1.msra.mxu0 0.0
        %561 = vmatprep.subr.mxu0 0.0
        %562 = vmatpush1.msra.mxu0 0.0
        %563 = vmatprep.subr.mxu0 0.0
        %564 = vmatpush1.msra.mxu0 0.0
        %565 = vmatprep.subr.mxu0 0.0
        %566 = vmatpush1.msra.mxu0 0.0
        %567 = vmatprep.subr.mxu0 0.0
        %568 = vmatpush1.msra.mxu0 0.0
        %569 = vmatprep.subr.mxu0 0.0
        %570 = vmatpush1.msra.mxu0 0.0
        %571 = vmatprep.subr.mxu0 0.0
        %572 = vmatpush1.msra.mxu0 0.0
        %573 = vmatprep.subr.mxu0 0.0
        %574 = vmatpush1.msra.mxu0 0.0
        %575 = vmatprep.subr.mxu0 0.0
        %576 = vmatpush1.msra.mxu0 0.0
        %577 = vmatprep.subr.mxu0 0.0
        %578 = vmatpush1.msra.mxu0 0.0
        %579 = vmatprep.mubr.f32.mxu0 0.0
        %580 = vmatmul.mubr.f32.gmra.mrb[0].mxu0 %v513
        %v581 = vpop.f32.mrb[0].mxu0
        %v582 = vadd.f32 %v509, %v581
        %v583 = vpop.f32.mrb[0].mxu0
        %584 = vdwg.mxu0
        %v585 = vld [vmem:[#allocation8] sm:$0xff]
        %v586 = vld [vmem:[#allocation8 + $0x8] sm:$0xff]
        %v587 = vld [vmem:[#allocation8 + $0x10] sm:$0xff]
        %v588 = vld [vmem:[#allocation8 + $0x18] sm:$0xff]
        %v589 = vld [vmem:[%s4] sm:$0x1]
        %v591 = vlaneseq
        %v592 = vshrl.u32 %v591, 7
        %v593 = vsub.s32 0, %v592
        %v594 = vrot.slane %v589, %v593
        %v597 = vsel %vm511, %v499, 0
        %599 = vmatprep.subr.mxu0 0.0
        %600 = vmatpush1.msra.mxu0 %v585
        %601 = vmatprep.subr.mxu0 0.0
        %602 = vmatpush1.msra.mxu0 %v586
        %603 = vmatprep.subr.mxu0 0.0
        %604 = vmatpush1.msra.mxu0 %v587
        %605 = vmatprep.subr.mxu0 0.0
        %606 = vmatpush1.msra.mxu0 %v588
        %607 = vmatprep.subr.mxu0 0.0
        %608 = vmatpush1.msra.mxu0 0.0
        %609 = vmatprep.subr.mxu0 0.0
        %610 = vmatpush1.msra.mxu0 0.0
        %611 = vmatprep.subr.mxu0 0.0
        %612 = vmatpush1.msra.mxu0 0.0
        %613 = vmatprep.subr.mxu0 0.0
        %614 = vmatpush1.msra.mxu0 0.0
        %615 = vmatprep.subr.mxu0 0.0
        %616 = vmatpush1.msra.mxu0 0.0
        %617 = vmatprep.subr.mxu0 0.0
        %618 = vmatpush1.msra.mxu0 0.0
        %619 = vmatprep.subr.mxu0 0.0
        %620 = vmatpush1.msra.mxu0 0.0
        %621 = vmatprep.subr.mxu0 0.0
        %622 = vmatpush1.msra.mxu0 0.0
        %623 = vmatprep.subr.mxu0 0.0
        %624 = vmatpush1.msra.mxu0 0.0
        %625 = vmatprep.subr.mxu0 0.0
        %626 = vmatpush1.msra.mxu0 0.0
        %627 = vmatprep.subr.mxu0 0.0
        %628 = vmatpush1.msra.mxu0 0.0
        %629 = vmatprep.subr.mxu0 0.0
        %630 = vmatpush1.msra.mxu0 0.0
        %631 = vmatprep.subr.mxu0 0.0
        %632 = vmatpush1.msra.mxu0 0.0
        %633 = vmatprep.subr.mxu0 0.0
        %634 = vmatpush1.msra.mxu0 0.0
        %635 = vmatprep.subr.mxu0 0.0
        %636 = vmatpush1.msra.mxu0 0.0
        %637 = vmatprep.subr.mxu0 0.0
        %638 = vmatpush1.msra.mxu0 0.0
        %639 = vmatprep.subr.mxu0 0.0
        %640 = vmatpush1.msra.mxu0 0.0
        %641 = vmatprep.subr.mxu0 0.0
        %642 = vmatpush1.msra.mxu0 0.0
        %643 = vmatprep.subr.mxu0 0.0
        %644 = vmatpush1.msra.mxu0 0.0
        %645 = vmatprep.subr.mxu0 0.0
        %646 = vmatpush1.msra.mxu0 0.0
        %647 = vmatprep.subr.mxu0 0.0
        %648 = vmatpush1.msra.mxu0 0.0
        %649 = vmatprep.subr.mxu0 0.0
        %650 = vmatpush1.msra.mxu0 0.0
        %651 = vmatprep.subr.mxu0 0.0
        %652 = vmatpush1.msra.mxu0 0.0
        %653 = vmatprep.subr.mxu0 0.0
        %654 = vmatpush1.msra.mxu0 0.0
        %655 = vmatprep.subr.mxu0 0.0
        %656 = vmatpush1.msra.mxu0 0.0
        %657 = vmatprep.subr.mxu0 0.0
        %658 = vmatpush1.msra.mxu0 0.0
        %659 = vmatprep.subr.mxu0 0.0
        %660 = vmatpush1.msra.mxu0 0.0
        %661 = vmatprep.subr.mxu0 0.0
        %662 = vmatpush1.msra.mxu0 0.0
        %663 = vmatprep.mubr.f32.mxu0 0.0
        %664 = vmatmul.mubr.f32.gmra.mrb[0].mxu0 %v597
        %v665 = vpop.f32.mrb[0].mxu0
        %v666 = vadd.f32 %v594, %v665
        %v667 = vpop.f32.mrb[0].mxu0
        %668 = vdwg.mxu0
        %v669 = vlaneseq
        %v670 = vshrl.u32 %v669, 7
        %v671 = vadd.s32 %v670, 4
        %v672 = vlaneseq
        %v673 = vand.u32 %v672, 127
        %vm674 = vcmp.gt.s32.totalorder %v673, %v671
        %v675 = vld [vmem:[%s417] sm:$0x1]
        %vm676 = vcmp.gt.f32.partialorder %v675, 0.5
        %v677 = vsel %vm676, 1, 0
        %v678 = vlaneseq
        %v679 = vshrl.u32 %v678, 7
        %v680 = vsub.s32 0, %v679
        %v681 = vrot.slane %v677, %v680
        %vm682 = vcmp.eq.s32.totalorder %v681, 1
        %vm683 = vmor %vm674, %vm682
        %vm684 = vcmp.ne.s32.totalorder %v673, %v671
        %vm685 = vmand %vm683, %vm684
        %vm686 = vcmask 64512
        %v688 = vsel %vm686, %v666, 0
        %v691 = vsel %vm686, %v582, 0
        %693 = vmatprep.subr.mxu0 0.0
        %694 = vmatpush1.xpose.msra.mxu0 %v691
        %695 = vmatprep.subr.mxu0 0.0
        %696 = vmatpush1.xpose.msra.mxu0 0.0
        %697 = vmatprep.subr.mxu0 0.0
        %698 = vmatpush1.xpose.msra.mxu0 0.0
        %699 = vmatprep.subr.mxu0 0.0
        %700 = vmatpush1.xpose.msra.mxu0 0.0
        %701 = vmatprep.subr.mxu0 0.0
        %702 = vmatpush1.xpose.msra.mxu0 0.0
        %703 = vmatprep.subr.mxu0 0.0
        %704 = vmatpush1.xpose.msra.mxu0 0.0
        %705 = vmatprep.subr.mxu0 0.0
        %706 = vmatpush1.xpose.msra.mxu0 0.0
        %707 = vmatprep.subr.mxu0 0.0
        %708 = vmatpush1.xpose.msra.mxu0 0.0
        %709 = vmatprep.subr.mxu0 0.0
        %710 = vmatpush1.xpose.msra.mxu0 0.0
        %711 = vmatprep.subr.mxu0 0.0
        %712 = vmatpush1.xpose.msra.mxu0 0.0
        %713 = vmatprep.subr.mxu0 0.0
        %714 = vmatpush1.xpose.msra.mxu0 0.0
        %715 = vmatprep.subr.mxu0 0.0
        %716 = vmatpush1.xpose.msra.mxu0 0.0
        %717 = vmatprep.subr.mxu0 0.0
        %718 = vmatpush1.xpose.msra.mxu0 0.0
        %719 = vmatprep.subr.mxu0 0.0
        %720 = vmatpush1.xpose.msra.mxu0 0.0
        %721 = vmatprep.subr.mxu0 0.0
        %722 = vmatpush1.xpose.msra.mxu0 0.0
        %723 = vmatprep.subr.mxu0 0.0
        %724 = vmatpush1.xpose.msra.mxu0 0.0
        %725 = vmatprep.subr.mxu0 0.0
        %726 = vmatpush1.xpose.msra.mxu0 0.0
        %727 = vmatprep.subr.mxu0 0.0
        %728 = vmatpush1.xpose.msra.mxu0 0.0
        %729 = vmatprep.subr.mxu0 0.0
        %730 = vmatpush1.xpose.msra.mxu0 0.0
        %731 = vmatprep.subr.mxu0 0.0
        %732 = vmatpush1.xpose.msra.mxu0 0.0
        %733 = vmatprep.subr.mxu0 0.0
        %734 = vmatpush1.xpose.msra.mxu0 0.0
        %735 = vmatprep.subr.mxu0 0.0
        %736 = vmatpush1.xpose.msra.mxu0 0.0
        %737 = vmatprep.subr.mxu0 0.0
        %738 = vmatpush1.xpose.msra.mxu0 0.0
        %739 = vmatprep.subr.mxu0 0.0
        %740 = vmatpush1.xpose.msra.mxu0 0.0
        %741 = vmatprep.subr.mxu0 0.0
        %742 = vmatpush1.xpose.msra.mxu0 0.0
        %743 = vmatprep.subr.mxu0 0.0
        %744 = vmatpush1.xpose.msra.mxu0 0.0
        %745 = vmatprep.subr.mxu0 0.0
        %746 = vmatpush1.xpose.msra.mxu0 0.0
        %747 = vmatprep.subr.mxu0 0.0
        %748 = vmatpush1.xpose.msra.mxu0 0.0
        %749 = vmatprep.subr.mxu0 0.0
        %750 = vmatpush1.xpose.msra.mxu0 0.0
        %751 = vmatprep.subr.mxu0 0.0
        %752 = vmatpush1.xpose.msra.mxu0 0.0
        %753 = vmatprep.subr.mxu0 0.0
        %754 = vmatpush1.xpose.msra.mxu0 0.0
        %755 = vmatprep.subr.mxu0 0.0
        %756 = vmatpush1.xpose.msra.mxu0 0.0
        %757 = vmatprep.mubr.f32.mxu0 0.0
        %758 = vmatmul.mubr.f32.gmra.mrb[0].mxu0 %v688
        %v759 = vpop.f32.mrb[0].mxu0
        %v760 = vadd.f32 0.0, %v759
        %v761 = vpop.f32.mrb[0].mxu0
        %762 = vdwg.mxu0
        %v763 = vsel %vm685, -1e+30, %v760
        %vm764 = vcmask 60416
        %v765 = vsel %vm764, %v763, -inf
        %766 = vmax.xlane.f32.xlu0 %v765
        %v767 = vpop.xlane.xlu0 %766
        %v768 = vsub.f32 %v763, %v767
        %v769 = vmul.f32 %v768, 1.442695
        %v770 = vpow.pop %v769
        %v771 = vsel %vm764, %v770, 0.0
        %772 = vadd.xlane.f32.xlu0 %v771
        %v773 = vpop.xlane.xlu0 %772
        %v774 = vrcp.pop %v773
        %v775 = vmul.f32 %v770, %v774
        %776 = vrot.lane.b32.xlu0 %v582, 96
        %v777 = vpop.permute.xlu0 %776
        %v780 = vsel %vm686, %v775, 0
        %782 = vmatprep.subr.mxu0 0.0
        %783 = vmatpush1.msra.mxu0 %v777
        %784 = vmatprep.subr.mxu0 0.0
        %785 = vmatpush1.msra.mxu0 0.0
        %786 = vmatprep.subr.mxu0 0.0
        %787 = vmatpush1.msra.mxu0 0.0
        %788 = vmatprep.subr.mxu0 0.0
        %789 = vmatpush1.msra.mxu0 0.0
        %790 = vmatprep.subr.mxu0 0.0
        %791 = vmatpush1.msra.mxu0 0.0
        %792 = vmatprep.subr.mxu0 0.0
        %793 = vmatpush1.msra.mxu0 0.0
        %794 = vmatprep.subr.mxu0 0.0
        %795 = vmatpush1.msra.mxu0 0.0
        %796 = vmatprep.subr.mxu0 0.0
        %797 = vmatpush1.msra.mxu0 0.0
        %798 = vmatprep.subr.mxu0 0.0
        %799 = vmatpush1.msra.mxu0 0.0
        %800 = vmatprep.subr.mxu0 0.0
        %801 = vmatpush1.msra.mxu0 0.0
        %802 = vmatprep.subr.mxu0 0.0
        %803 = vmatpush1.msra.mxu0 0.0
        %804 = vmatprep.subr.mxu0 0.0
        %805 = vmatpush1.msra.mxu0 0.0
        %806 = vmatprep.subr.mxu0 0.0
        %807 = vmatpush1.msra.mxu0 0.0
        %808 = vmatprep.subr.mxu0 0.0
        %809 = vmatpush1.msra.mxu0 0.0
        %810 = vmatprep.subr.mxu0 0.0
        %811 = vmatpush1.msra.mxu0 0.0
        %812 = vmatprep.subr.mxu0 0.0
        %813 = vmatpush1.msra.mxu0 0.0
        %814 = vmatprep.subr.mxu0 0.0
        %815 = vmatpush1.msra.mxu0 0.0
        %816 = vmatprep.subr.mxu0 0.0
        %817 = vmatpush1.msra.mxu0 0.0
        %818 = vmatprep.subr.mxu0 0.0
        %819 = vmatpush1.msra.mxu0 0.0
        %820 = vmatprep.subr.mxu0 0.0
        %821 = vmatpush1.msra.mxu0 0.0
        %822 = vmatprep.subr.mxu0 0.0
        %823 = vmatpush1.msra.mxu0 0.0
        %824 = vmatprep.subr.mxu0 0.0
        %825 = vmatpush1.msra.mxu0 0.0
        %826 = vmatprep.subr.mxu0 0.0
        %827 = vmatpush1.msra.mxu0 0.0
        %828 = vmatprep.subr.mxu0 0.0
        %829 = vmatpush1.msra.mxu0 0.0
        %830 = vmatprep.subr.mxu0 0.0
        %831 = vmatpush1.msra.mxu0 0.0
        %832 = vmatprep.subr.mxu0 0.0
        %833 = vmatpush1.msra.mxu0 0.0
        %834 = vmatprep.subr.mxu0 0.0
        %835 = vmatpush1.msra.mxu0 0.0
        %836 = vmatprep.subr.mxu0 0.0
        %837 = vmatpush1.msra.mxu0 0.0
        %838 = vmatprep.subr.mxu0 0.0
        %839 = vmatpush1.msra.mxu0 0.0
        %840 = vmatprep.subr.mxu0 0.0
        %841 = vmatpush1.msra.mxu0 0.0
        %842 = vmatprep.subr.mxu0 0.0
        %843 = vmatpush1.msra.mxu0 0.0
        %844 = vmatprep.subr.mxu0 0.0
        %845 = vmatpush1.msra.mxu0 0.0
        %846 = vmatprep.mubr.f32.mxu0 0.0
        %847 = vmatmul.mubr.f32.gmra.mrb[0].mxu0 %v780
        %v848 = vpop.f32.mrb[0].mxu0
        %v849 = vadd.f32 0.0, %v848
        %v850 = vpop.f32.mrb[0].mxu0
        %851 = vdwg.mxu0
        %v852 = vld [vmem:[#allocation11] sm:$0xff]
        %v854 = vsel %vm686, %v849, 0
        %856 = vmatprep.subr.mxu0 0.0
        %857 = vmatpush1.msra.mxu0 %v852
        %858 = vmatprep.subr.mxu0 0.0
        %859 = vmatpush1.msra.mxu0 0.0
        %860 = vmatprep.subr.mxu0 0.0
        %861 = vmatpush1.msra.mxu0 0.0
        %862 = vmatprep.subr.mxu0 0.0
        %863 = vmatpush1.msra.mxu0 0.0
        %864 = vmatprep.subr.mxu0 0.0
        %865 = vmatpush1.msra.mxu0 0.0
        %866 = vmatprep.subr.mxu0 0.0
        %867 = vmatpush1.msra.mxu0 0.0
        %868 = vmatprep.subr.mxu0 0.0
        %869 = vmatpush1.msra.mxu0 0.0
        %870 = vmatprep.subr.mxu0 0.0
        %871 = vmatpush1.msra.mxu0 0.0
        %872 = vmatprep.subr.mxu0 0.0
        %873 = vmatpush1.msra.mxu0 0.0
        %874 = vmatprep.subr.mxu0 0.0
        %875 = vmatpush1.msra.mxu0 0.0
        %876 = vmatprep.subr.mxu0 0.0
        %877 = vmatpush1.msra.mxu0 0.0
        %878 = vmatprep.subr.mxu0 0.0
        %879 = vmatpush1.msra.mxu0 0.0
        %880 = vmatprep.subr.mxu0 0.0
        %881 = vmatpush1.msra.mxu0 0.0
        %882 = vmatprep.subr.mxu0 0.0
        %883 = vmatpush1.msra.mxu0 0.0
        %884 = vmatprep.subr.mxu0 0.0
        %885 = vmatpush1.msra.mxu0 0.0
        %886 = vmatprep.subr.mxu0 0.0
        %887 = vmatpush1.msra.mxu0 0.0
        %888 = vmatprep.subr.mxu0 0.0
        %889 = vmatpush1.msra.mxu0 0.0
        %890 = vmatprep.subr.mxu0 0.0
        %891 = vmatpush1.msra.mxu0 0.0
        %892 = vmatprep.subr.mxu0 0.0
        %893 = vmatpush1.msra.mxu0 0.0
        %894 = vmatprep.subr.mxu0 0.0
        %895 = vmatpush1.msra.mxu0 0.0
        %896 = vmatprep.subr.mxu0 0.0
        %897 = vmatpush1.msra.mxu0 0.0
        %898 = vmatprep.subr.mxu0 0.0
        %899 = vmatpush1.msra.mxu0 0.0
        %900 = vmatprep.subr.mxu0 0.0
        %901 = vmatpush1.msra.mxu0 0.0
        %902 = vmatprep.subr.mxu0 0.0
        %903 = vmatpush1.msra.mxu0 0.0
        %904 = vmatprep.subr.mxu0 0.0
        %905 = vmatpush1.msra.mxu0 0.0
        %906 = vmatprep.subr.mxu0 0.0
        %907 = vmatpush1.msra.mxu0 0.0
        %908 = vmatprep.subr.mxu0 0.0
        %909 = vmatpush1.msra.mxu0 0.0
        %910 = vmatprep.subr.mxu0 0.0
        %911 = vmatpush1.msra.mxu0 0.0
        %912 = vmatprep.subr.mxu0 0.0
        %913 = vmatpush1.msra.mxu0 0.0
        %914 = vmatprep.subr.mxu0 0.0
        %915 = vmatpush1.msra.mxu0 0.0
        %916 = vmatprep.subr.mxu0 0.0
        %917 = vmatpush1.msra.mxu0 0.0
        %918 = vmatprep.subr.mxu0 0.0
        %919 = vmatpush1.msra.mxu0 0.0
        %920 = vmatprep.mubr.f32.mxu0 0.0
        %921 = vmatmul.mubr.f32.gmra.mrb[0].mxu0 %v854
        %v922 = vpop.f32.mrb[0].mxu0
        %v923 = vadd.f32 0.0, %v922
        %v924 = vpop.f32.mrb[0].mxu0
        %925 = vdwg.mxu0
        %926 = vrot.lane.b32.xlu0 %v666, 120
        %v927 = vpop.permute.xlu0 %926
        %928 = vrot.lane.b32.xlu0 %v582, 120
        %v929 = vpop.permute.xlu0 %928
        %v930 = vsel %vm686, %v927, 0
        %v932 = vsel %vm686, %v929, 0
        %934 = vmatprep.subr.mxu0 0.0
        %935 = vmatpush1.xpose.msra.mxu0 %v932
        %936 = vmatprep.subr.mxu0 0.0
        %937 = vmatpush1.xpose.msra.mxu0 0.0
        %938 = vmatprep.subr.mxu0 0.0
        %939 = vmatpush1.xpose.msra.mxu0 0.0
        %940 = vmatprep.subr.mxu0 0.0
        %941 = vmatpush1.xpose.msra.mxu0 0.0
        %942 = vmatprep.subr.mxu0 0.0
        %943 = vmatpush1.xpose.msra.mxu0 0.0
        %944 = vmatprep.subr.mxu0 0.0
        %945 = vmatpush1.xpose.msra.mxu0 0.0
        %946 = vmatprep.subr.mxu0 0.0
        %947 = vmatpush1.xpose.msra.mxu0 0.0
        %948 = vmatprep.subr.mxu0 0.0
        %949 = vmatpush1.xpose.msra.mxu0 0.0
        %950 = vmatprep.subr.mxu0 0.0
        %951 = vmatpush1.xpose.msra.mxu0 0.0
        %952 = vmatprep.subr.mxu0 0.0
        %953 = vmatpush1.xpose.msra.mxu0 0.0
        %954 = vmatprep.subr.mxu0 0.0
        %955 = vmatpush1.xpose.msra.mxu0 0.0
        %956 = vmatprep.subr.mxu0 0.0
        %957 = vmatpush1.xpose.msra.mxu0 0.0
        %958 = vmatprep.subr.mxu0 0.0
        %959 = vmatpush1.xpose.msra.mxu0 0.0
        %960 = vmatprep.subr.mxu0 0.0
        %961 = vmatpush1.xpose.msra.mxu0 0.0
        %962 = vmatprep.subr.mxu0 0.0
        %963 = vmatpush1.xpose.msra.mxu0 0.0
        %964 = vmatprep.subr.mxu0 0.0
        %965 = vmatpush1.xpose.msra.mxu0 0.0
        %966 = vmatprep.subr.mxu0 0.0
        %967 = vmatpush1.xpose.msra.mxu0 0.0
        %968 = vmatprep.subr.mxu0 0.0
        %969 = vmatpush1.xpose.msra.mxu0 0.0
        %970 = vmatprep.subr.mxu0 0.0
        %971 = vmatpush1.xpose.msra.mxu0 0.0
        %972 = vmatprep.subr.mxu0 0.0
        %973 = vmatpush1.xpose.msra.mxu0 0.0
        %974 = vmatprep.subr.mxu0 0.0
        %975 = vmatpush1.xpose.msra.mxu0 0.0
        %976 = vmatprep.subr.mxu0 0.0
        %977 = vmatpush1.xpose.msra.mxu0 0.0
        %978 = vmatprep.subr.mxu0 0.0
        %979 = vmatpush1.xpose.msra.mxu0 0.0
        %980 = vmatprep.subr.mxu0 0.0
        %981 = vmatpush1.xpose.msra.mxu0 0.0
        %982 = vmatprep.subr.mxu0 0.0
        %983 = vmatpush1.xpose.msra.mxu0 0.0
        %984 = vmatprep.subr.mxu0 0.0
        %985 = vmatpush1.xpose.msra.mxu0 0.0
        %986 = vmatprep.subr.mxu0 0.0
        %987 = vmatpush1.xpose.msra.mxu0 0.0
        %988 = vmatprep.subr.mxu0 0.0
        %989 = vmatpush1.xpose.msra.mxu0 0.0
        %990 = vmatprep.subr.mxu0 0.0
        %991 = vmatpush1.xpose.msra.mxu0 0.0
        %992 = vmatprep.subr.mxu0 0.0
        %993 = vmatpush1.xpose.msra.mxu0 0.0
        %994 = vmatprep.subr.mxu0 0.0
        %995 = vmatpush1.xpose.msra.mxu0 0.0
        %996 = vmatprep.subr.mxu0 0.0
        %997 = vmatpush1.xpose.msra.mxu0 0.0
        %998 = vmatprep.mubr.f32.mxu0 0.0
        %999 = vmatmul.mubr.f32.gmra.mrb[0].mxu0 %v930
        %v1000 = vpop.f32.mrb[0].mxu0
        %v1001 = vadd.f32 0.0, %v1000
        %v1002 = vpop.f32.mrb[0].mxu0
        %1003 = vdwg.mxu0
        %v1004 = vsel %vm685, -1e+30, %v1001
        %v1005 = vsel %vm764, %v1004, -inf
        %1006 = vmax.xlane.f32.xlu0 %v1005
        %v1007 = vpop.xlane.xlu0 %1006
        %v1008 = vsub.f32 %v1004, %v1007
        %v1009 = vmul.f32 %v1008, 1.442695
        %v1010 = vpow.pop %v1009
        %v1011 = vsel %vm764, %v1010, 0.0
        %1012 = vadd.xlane.f32.xlu0 %v1011
        %v1013 = vpop.xlane.xlu0 %1012
        %v1014 = vrcp.pop %v1013
        %v1015 = vmul.f32 %v1010, %v1014
        %v1016 = vadd.f32 %v775, %v1015
        %1017 = vrot.lane.b32.xlu0 %v582, 88
        %v1018 = vpop.permute.xlu0 %1017
        %v1021 = vsel %vm686, %v1015, 0
        %1023 = vmatprep.subr.mxu0 0.0
        %1024 = vmatpush1.msra.mxu0 %v1018
        %1025 = vmatprep.subr.mxu0 0.0
        %1026 = vmatpush1.msra.mxu0 0.0
        %1027 = vmatprep.subr.mxu0 0.0
        %1028 = vmatpush1.msra.mxu0 0.0
        %1029 = vmatprep.subr.mxu0 0.0
        %1030 = vmatpush1.msra.mxu0 0.0
        %1031 = vmatprep.subr.mxu0 0.0
        %1032 = vmatpush1.msra.mxu0 0.0
        %1033 = vmatprep.subr.mxu0 0.0
        %1034 = vmatpush1.msra.mxu0 0.0
        %1035 = vmatprep.subr.mxu0 0.0
        %1036 = vmatpush1.msra.mxu0 0.0
        %1037 = vmatprep.subr.mxu0 0.0
        %1038 = vmatpush1.msra.mxu0 0.0
        %1039 = vmatprep.subr.mxu0 0.0
        %1040 = vmatpush1.msra.mxu0 0.0
        %1041 = vmatprep.subr.mxu0 0.0
        %1042 = vmatpush1.msra.mxu0 0.0
        %1043 = vmatprep.subr.mxu0 0.0
        %1044 = vmatpush1.msra.mxu0 0.0
        %1045 = vmatprep.subr.mxu0 0.0
        %1046 = vmatpush1.msra.mxu0 0.0
        %1047 = vmatprep.subr.mxu0 0.0
        %1048 = vmatpush1.msra.mxu0 0.0
        %1049 = vmatprep.subr.mxu0 0.0
        %1050 = vmatpush1.msra.mxu0 0.0
        %1051 = vmatprep.subr.mxu0 0.0
        %1052 = vmatpush1.msra.mxu0 0.0
        %1053 = vmatprep.subr.mxu0 0.0
        %1054 = vmatpush1.msra.mxu0 0.0
        %1055 = vmatprep.subr.mxu0 0.0
        %1056 = vmatpush1.msra.mxu0 0.0
        %1057 = vmatprep.subr.mxu0 0.0
        %1058 = vmatpush1.msra.mxu0 0.0
        %1059 = vmatprep.subr.mxu0 0.0
        %1060 = vmatpush1.msra.mxu0 0.0
        %1061 = vmatprep.subr.mxu0 0.0
        %1062 = vmatpush1.msra.mxu0 0.0
        %1063 = vmatprep.subr.mxu0 0.0
        %1064 = vmatpush1.msra.mxu0 0.0
        %1065 = vmatprep.subr.mxu0 0.0
        %1066 = vmatpush1.msra.mxu0 0.0
        %1067 = vmatprep.subr.mxu0 0.0
        %1068 = vmatpush1.msra.mxu0 0.0
        %1069 = vmatprep.subr.mxu0 0.0
        %1070 = vmatpush1.msra.mxu0 0.0
        %1071 = vmatprep.subr.mxu0 0.0
        %1072 = vmatpush1.msra.mxu0 0.0
        %1073 = vmatprep.subr.mxu0 0.0
        %1074 = vmatpush1.msra.mxu0 0.0
        %1075 = vmatprep.subr.mxu0 0.0
        %1076 = vmatpush1.msra.mxu0 0.0
        %1077 = vmatprep.subr.mxu0 0.0
        %1078 = vmatpush1.msra.mxu0 0.0
        %1079 = vmatprep.subr.mxu0 0.0
        %1080 = vmatpush1.msra.mxu0 0.0
        %1081 = vmatprep.subr.mxu0 0.0
        %1082 = vmatpush1.msra.mxu0 0.0
        %1083 = vmatprep.subr.mxu0 0.0
        %1084 = vmatpush1.msra.mxu0 0.0
        %1085 = vmatprep.subr.mxu0 0.0
        %1086 = vmatpush1.msra.mxu0 0.0
        %1087 = vmatprep.mubr.f32.mxu0 0.0
        %1088 = vmatmul.mubr.f32.gmra.mrb[0].mxu0 %v1021
        %v1089 = vpop.f32.mrb[0].mxu0
        %v1090 = vadd.f32 0.0, %v1089
        %v1091 = vpop.f32.mrb[0].mxu0
        %1092 = vdwg.mxu0
        %v1093 = vld [vmem:[#allocation11 + $0x8] sm:$0xff]
        %v1095 = vsel %vm686, %v1090, 0
        %1097 = vmatprep.subr.mxu0 0.0
        %1098 = vmatpush1.msra.mxu0 %v1093
        %1099 = vmatprep.subr.mxu0 0.0
        %1100 = vmatpush1.msra.mxu0 0.0
        %1101 = vmatprep.subr.mxu0 0.0
        %1102 = vmatpush1.msra.mxu0 0.0
        %1103 = vmatprep.subr.mxu0 0.0
        %1104 = vmatpush1.msra.mxu0 0.0
        %1105 = vmatprep.subr.mxu0 0.0
        %1106 = vmatpush1.msra.mxu0 0.0
        %1107 = vmatprep.subr.mxu0 0.0
        %1108 = vmatpush1.msra.mxu0 0.0
        %1109 = vmatprep.subr.mxu0 0.0
        %1110 = vmatpush1.msra.mxu0 0.0
        %1111 = vmatprep.subr.mxu0 0.0
        %1112 = vmatpush1.msra.mxu0 0.0
        %1113 = vmatprep.subr.mxu0 0.0
        %1114 = vmatpush1.msra.mxu0 0.0
        %1115 = vmatprep.subr.mxu0 0.0
        %1116 = vmatpush1.msra.mxu0 0.0
        %1117 = vmatprep.subr.mxu0 0.0
        %1118 = vmatpush1.msra.mxu0 0.0
        %1119 = vmatprep.subr.mxu0 0.0
        %1120 = vmatpush1.msra.mxu0 0.0
        %1121 = vmatprep.subr.mxu0 0.0
        %1122 = vmatpush1.msra.mxu0 0.0
        %1123 = vmatprep.subr.mxu0 0.0
        %1124 = vmatpush1.msra.mxu0 0.0
        %1125 = vmatprep.subr.mxu0 0.0
        %1126 = vmatpush1.msra.mxu0 0.0
        %1127 = vmatprep.subr.mxu0 0.0
        %1128 = vmatpush1.msra.mxu0 0.0
        %1129 = vmatprep.subr.mxu0 0.0
        %1130 = vmatpush1.msra.mxu0 0.0
        %1131 = vmatprep.subr.mxu0 0.0
        %1132 = vmatpush1.msra.mxu0 0.0
        %1133 = vmatprep.subr.mxu0 0.0
        %1134 = vmatpush1.msra.mxu0 0.0
        %1135 = vmatprep.subr.mxu0 0.0
        %1136 = vmatpush1.msra.mxu0 0.0
        %1137 = vmatprep.subr.mxu0 0.0
        %1138 = vmatpush1.msra.mxu0 0.0
        %1139 = vmatprep.subr.mxu0 0.0
        %1140 = vmatpush1.msra.mxu0 0.0
        %1141 = vmatprep.subr.mxu0 0.0
        %1142 = vmatpush1.msra.mxu0 0.0
        %1143 = vmatprep.subr.mxu0 0.0
        %1144 = vmatpush1.msra.mxu0 0.0
        %1145 = vmatprep.subr.mxu0 0.0
        %1146 = vmatpush1.msra.mxu0 0.0
        %1147 = vmatprep.subr.mxu0 0.0
        %1148 = vmatpush1.msra.mxu0 0.0
        %1149 = vmatprep.subr.mxu0 0.0
        %1150 = vmatpush1.msra.mxu0 0.0
        %1151 = vmatprep.subr.mxu0 0.0
        %1152 = vmatpush1.msra.mxu0 0.0
        %1153 = vmatprep.subr.mxu0 0.0
        %1154 = vmatpush1.msra.mxu0 0.0
        %1155 = vmatprep.subr.mxu0 0.0
        %1156 = vmatpush1.msra.mxu0 0.0
        %1157 = vmatprep.subr.mxu0 0.0
        %1158 = vmatpush1.msra.mxu0 0.0
        %1159 = vmatprep.subr.mxu0 0.0
        %1160 = vmatpush1.msra.mxu0 0.0
        %1161 = vmatprep.mubr.f32.mxu0 0.0
        %1162 = vmatmul.mubr.f32.gmra.mrb[0].mxu0 %v1095
        %v1163 = vpop.f32.mrb[0].mxu0
        %v1164 = vadd.f32 0.0, %v1163
        %v1165 = vpop.f32.mrb[0].mxu0
        %1166 = vdwg.mxu0
        %v1167 = vadd.f32 %v923, %v1164
        %1168 = vrot.lane.b32.xlu0 %v666, 112
        %v1169 = vpop.permute.xlu0 %1168
        %1170 = vrot.lane.b32.xlu0 %v582, 112
        %v1171 = vpop.permute.xlu0 %1170
        %v1172 = vsel %vm686, %v1169, 0
        %v1174 = vsel %vm686, %v1171, 0
        %1176 = vmatprep.subr.mxu0 0.0
        %1177 = vmatpush1.xpose.msra.mxu0 %v1174
        %1178 = vmatprep.subr.mxu0 0.0
        %1179 = vmatpush1.xpose.msra.mxu0 0.0
        %1180 = vmatprep.subr.mxu0 0.0
        %1181 = vmatpush1.xpose.msra.mxu0 0.0
        %1182 = vmatprep.subr.mxu0 0.0
        %1183 = vmatpush1.xpose.msra.mxu0 0.0
        %1184 = vmatprep.subr.mxu0 0.0
        %1185 = vmatpush1.xpose.msra.mxu0 0.0
        %1186 = vmatprep.subr.mxu0 0.0
        %1187 = vmatpush1.xpose.msra.mxu0 0.0
        %1188 = vmatprep.subr.mxu0 0.0
        %1189 = vmatpush1.xpose.msra.mxu0 0.0
        %1190 = vmatprep.subr.mxu0 0.0
        %1191 = vmatpush1.xpose.msra.mxu0 0.0
        %1192 = vmatprep.subr.mxu0 0.0
        %1193 = vmatpush1.xpose.msra.mxu0 0.0
        %1194 = vmatprep.subr.mxu0 0.0
        %1195 = vmatpush1.xpose.msra.mxu0 0.0
        %1196 = vmatprep.subr.mxu0 0.0
        %1197 = vmatpush1.xpose.msra.mxu0 0.0
        %1198 = vmatprep.subr.mxu0 0.0
        %1199 = vmatpush1.xpose.msra.mxu0 0.0
        %1200 = vmatprep.subr.mxu0 0.0
        %1201 = vmatpush1.xpose.msra.mxu0 0.0
        %1202 = vmatprep.subr.mxu0 0.0
        %1203 = vmatpush1.xpose.msra.mxu0 0.0
        %1204 = vmatprep.subr.mxu0 0.0
        %1205 = vmatpush1.xpose.msra.mxu0 0.0
        %1206 = vmatprep.subr.mxu0 0.0
        %1207 = vmatpush1.xpose.msra.mxu0 0.0
        %1208 = vmatprep.subr.mxu0 0.0
        %1209 = vmatpush1.xpose.msra.mxu0 0.0
        %1210 = vmatprep.subr.mxu0 0.0
        %1211 = vmatpush1.xpose.msra.mxu0 0.0
        %1212 = vmatprep.subr.mxu0 0.0
        %1213 = vmatpush1.xpose.msra.mxu0 0.0
        %1214 = vmatprep.subr.mxu0 0.0
        %1215 = vmatpush1.xpose.msra.mxu0 0.0
        %1216 = vmatprep.subr.mxu0 0.0
        %1217 = vmatpush1.xpose.msra.mxu0 0.0
        %1218 = vmatprep.subr.mxu0 0.0
        %1219 = vmatpush1.xpose.msra.mxu0 0.0
        %1220 = vmatprep.subr.mxu0 0.0
        %1221 = vmatpush1.xpose.msra.mxu0 0.0
        %1222 = vmatprep.subr.mxu0 0.0
        %1223 = vmatpush1.xpose.msra.mxu0 0.0
        %1224 = vmatprep.subr.mxu0 0.0
        %1225 = vmatpush1.xpose.msra.mxu0 0.0
        %1226 = vmatprep.subr.mxu0 0.0
        %1227 = vmatpush1.xpose.msra.mxu0 0.0
        %1228 = vmatprep.subr.mxu0 0.0
        %1229 = vmatpush1.xpose.msra.mxu0 0.0
        %1230 = vmatprep.subr.mxu0 0.0
        %1231 = vmatpush1.xpose.msra.mxu0 0.0
        %1232 = vmatprep.subr.mxu0 0.0
        %1233 = vmatpush1.xpose.msra.mxu0 0.0
        %1234 = vmatprep.subr.mxu0 0.0
        %1235 = vmatpush1.xpose.msra.mxu0 0.0
        %1236 = vmatprep.subr.mxu0 0.0
        %1237 = vmatpush1.xpose.msra.mxu0 0.0
        %1238 = vmatprep.subr.mxu0 0.0
        %1239 = vmatpush1.xpose.msra.mxu0 0.0
        %1240 = vmatprep.mubr.f32.mxu0 0.0
        %1241 = vmatmul.mubr.f32.gmra.mrb[0].mxu0 %v1172
        %v1242 = vpop.f32.mrb[0].mxu0
        %v1243 = vadd.f32 0.0, %v1242
        %v1244 = vpop.f32.mrb[0].mxu0
        %1245 = vdwg.mxu0
        %v1246 = vsel %vm685, -1e+30, %v1243
        %v1247 = vsel %vm764, %v1246, -inf
        %1248 = vmax.xlane.f32.xlu0 %v1247
        %v1249 = vpop.xlane.xlu0 %1248
        %v1250 = vsub.f32 %v1246, %v1249
        %v1251 = vmul.f32 %v1250, 1.442695
        %v1252 = vpow.pop %v1251
        %v1253 = vsel %vm764, %v1252, 0.0
        %1254 = vadd.xlane.f32.xlu0 %v1253
        %v1255 = vpop.xlane.xlu0 %1254
        %v1256 = vrcp.pop %v1255
        %v1257 = vmul.f32 %v1252, %v1256
        %v1258 = vadd.f32 %v1016, %v1257
        %1259 = vrot.lane.b32.xlu0 %v582, 80
        %v1260 = vpop.permute.xlu0 %1259
        %v1263 = vsel %vm686, %v1257, 0
        %1265 = vmatprep.subr.mxu0 0.0
        %1266 = vmatpush1.msra.mxu0 %v1260
        %1267 = vmatprep.subr.mxu0 0.0
        %1268 = vmatpush1.msra.mxu0 0.0
        %1269 = vmatprep.subr.mxu0 0.0
        %1270 = vmatpush1.msra.mxu0 0.0
        %1271 = vmatprep.subr.mxu0 0.0
        %1272 = vmatpush1.msra.mxu0 0.0
        %1273 = vmatprep.subr.mxu0 0.0
        %1274 = vmatpush1.msra.mxu0 0.0
        %1275 = vmatprep.subr.mxu0 0.0
        %1276 = vmatpush1.msra.mxu0 0.0
        %1277 = vmatprep.subr.mxu0 0.0
        %1278 = vmatpush1.msra.mxu0 0.0
        %1279 = vmatprep.subr.mxu0 0.0
        %1280 = vmatpush1.msra.mxu0 0.0
        %1281 = vmatprep.subr.mxu0 0.0
        %1282 = vmatpush1.msra.mxu0 0.0
        %1283 = vmatprep.subr.mxu0 0.0
        %1284 = vmatpush1.msra.mxu0 0.0
        %1285 = vmatprep.subr.mxu0 0.0
        %1286 = vmatpush1.msra.mxu0 0.0
        %1287 = vmatprep.subr.mxu0 0.0
        %1288 = vmatpush1.msra.mxu0 0.0
        %1289 = vmatprep.subr.mxu0 0.0
        %1290 = vmatpush1.msra.mxu0 0.0
        %1291 = vmatprep.subr.mxu0 0.0
        %1292 = vmatpush1.msra.mxu0 0.0
        %1293 = vmatprep.subr.mxu0 0.0
        %1294 = vmatpush1.msra.mxu0 0.0
        %1295 = vmatprep.subr.mxu0 0.0
        %1296 = vmatpush1.msra.mxu0 0.0
        %1297 = vmatprep.subr.mxu0 0.0
        %1298 = vmatpush1.msra.mxu0 0.0
        %1299 = vmatprep.subr.mxu0 0.0
        %1300 = vmatpush1.msra.mxu0 0.0
        %1301 = vmatprep.subr.mxu0 0.0
        %1302 = vmatpush1.msra.mxu0 0.0
        %1303 = vmatprep.subr.mxu0 0.0
        %1304 = vmatpush1.msra.mxu0 0.0
        %1305 = vmatprep.subr.mxu0 0.0
        %1306 = vmatpush1.msra.mxu0 0.0
        %1307 = vmatprep.subr.mxu0 0.0
        %1308 = vmatpush1.msra.mxu0 0.0
        %1309 = vmatprep.subr.mxu0 0.0
        %1310 = vmatpush1.msra.mxu0 0.0
        %1311 = vmatprep.subr.mxu0 0.0
        %1312 = vmatpush1.msra.mxu0 0.0
        %1313 = vmatprep.subr.mxu0 0.0
        %1314 = vmatpush1.msra.mxu0 0.0
        %1315 = vmatprep.subr.mxu0 0.0
        %1316 = vmatpush1.msra.mxu0 0.0
        %1317 = vmatprep.subr.mxu0 0.0
        %1318 = vmatpush1.msra.mxu0 0.0
        %1319 = vmatprep.subr.mxu0 0.0
        %1320 = vmatpush1.msra.mxu0 0.0
        %1321 = vmatprep.subr.mxu0 0.0
        %1322 = vmatpush1.msra.mxu0 0.0
        %1323 = vmatprep.subr.mxu0 0.0
        %1324 = vmatpush1.msra.mxu0 0.0
        %1325 = vmatprep.subr.mxu0 0.0
        %1326 = vmatpush1.msra.mxu0 0.0
        %1327 = vmatprep.subr.mxu0 0.0
        %1328 = vmatpush1.msra.mxu0 0.0
        %1329 = vmatprep.mubr.f32.mxu0 0.0
        %1330 = vmatmul.mubr.f32.gmra.mrb[0].mxu0 %v1263
        %v1331 = vpop.f32.mrb[0].mxu0
        %v1332 = vadd.f32 0.0, %v1331
        %v1333 = vpop.f32.mrb[0].mxu0
        %1334 = vdwg.mxu0
        %v1335 = vld [vmem:[#allocation11 + $0x10] sm:$0xff]
        %v1337 = vsel %vm686, %v1332, 0
        %1339 = vmatprep.subr.mxu0 0.0
        %1340 = vmatpush1.msra.mxu0 %v1335
        %1341 = vmatprep.subr.mxu0 0.0
        %1342 = vmatpush1.msra.mxu0 0.0
        %1343 = vmatprep.subr.mxu0 0.0
        %1344 = vmatpush1.msra.mxu0 0.0
        %1345 = vmatprep.subr.mxu0 0.0
        %1346 = vmatpush1.msra.mxu0 0.0
        %1347 = vmatprep.subr.mxu0 0.0
        %1348 = vmatpush1.msra.mxu0 0.0
        %1349 = vmatprep.subr.mxu0 0.0
        %1350 = vmatpush1.msra.mxu0 0.0
        %1351 = vmatprep.subr.mxu0 0.0
        %1352 = vmatpush1.msra.mxu0 0.0
        %1353 = vmatprep.subr.mxu0 0.0
        %1354 = vmatpush1.msra.mxu0 0.0
        %1355 = vmatprep.subr.mxu0 0.0
        %1356 = vmatpush1.msra.mxu0 0.0
        %1357 = vmatprep.subr.mxu0 0.0
        %1358 = vmatpush1.msra.mxu0 0.0
        %1359 = vmatprep.subr.mxu0 0.0
        %1360 = vmatpush1.msra.mxu0 0.0
        %1361 = vmatprep.subr.mxu0 0.0
        %1362 = vmatpush1.msra.mxu0 0.0
        %1363 = vmatprep.subr.mxu0 0.0
        %1364 = vmatpush1.msra.mxu0 0.0
        %1365 = vmatprep.subr.mxu0 0.0
        %1366 = vmatpush1.msra.mxu0 0.0
        %1367 = vmatprep.subr.mxu0 0.0
        %1368 = vmatpush1.msra.mxu0 0.0
        %1369 = vmatprep.subr.mxu0 0.0
        %1370 = vmatpush1.msra.mxu0 0.0
        %1371 = vmatprep.subr.mxu0 0.0
        %1372 = vmatpush1.msra.mxu0 0.0
        %1373 = vmatprep.subr.mxu0 0.0
        %1374 = vmatpush1.msra.mxu0 0.0
        %1375 = vmatprep.subr.mxu0 0.0
        %1376 = vmatpush1.msra.mxu0 0.0
        %1377 = vmatprep.subr.mxu0 0.0
        %1378 = vmatpush1.msra.mxu0 0.0
        %1379 = vmatprep.subr.mxu0 0.0
        %1380 = vmatpush1.msra.mxu0 0.0
        %1381 = vmatprep.subr.mxu0 0.0
        %1382 = vmatpush1.msra.mxu0 0.0
        %1383 = vmatprep.subr.mxu0 0.0
        %1384 = vmatpush1.msra.mxu0 0.0
        %1385 = vmatprep.subr.mxu0 0.0
        %1386 = vmatpush1.msra.mxu0 0.0
        %1387 = vmatprep.subr.mxu0 0.0
        %1388 = vmatpush1.msra.mxu0 0.0
        %1389 = vmatprep.subr.mxu0 0.0
        %1390 = vmatpush1.msra.mxu0 0.0
        %1391 = vmatprep.subr.mxu0 0.0
        %1392 = vmatpush1.msra.mxu0 0.0
        %1393 = vmatprep.subr.mxu0 0.0
        %1394 = vmatpush1.msra.mxu0 0.0
        %1395 = vmatprep.subr.mxu0 0.0
        %1396 = vmatpush1.msra.mxu0 0.0
        %1397 = vmatprep.subr.mxu0 0.0
        %1398 = vmatpush1.msra.mxu0 0.0
        %1399 = vmatprep.subr.mxu0 0.0
        %1400 = vmatpush1.msra.mxu0 0.0
        %1401 = vmatprep.subr.mxu0 0.0
        %1402 = vmatpush1.msra.mxu0 0.0
        %1403 = vmatprep.mubr.f32.mxu0 0.0
        %1404 = vmatmul.mubr.f32.gmra.mrb[0].mxu0 %v1337
        %v1405 = vpop.f32.mrb[0].mxu0
        %v1406 = vadd.f32 0.0, %v1405
        %v1407 = vpop.f32.mrb[0].mxu0
        %1408 = vdwg.mxu0
        %v1409 = vadd.f32 %v1167, %v1406
        %1410 = vrot.lane.b32.xlu0 %v666, 104
        %v1411 = vpop.permute.xlu0 %1410
        %1412 = vrot.lane.b32.xlu0 %v582, 104
        %v1413 = vpop.permute.xlu0 %1412
        %v1414 = vsel %vm686, %v1411, 0
        %v1416 = vsel %vm686, %v1413, 0
        %1418 = vmatprep.subr.mxu0 0.0
        %1419 = vmatpush1.xpose.msra.mxu0 %v1416
        %1420 = vmatprep.subr.mxu0 0.0
        %1421 = vmatpush1.xpose.msra.mxu0 0.0
        %1422 = vmatprep.subr.mxu0 0.0
        %1423 = vmatpush1.xpose.msra.mxu0 0.0
        %1424 = vmatprep.subr.mxu0 0.0
        %1425 = vmatpush1.xpose.msra.mxu0 0.0
        %1426 = vmatprep.subr.mxu0 0.0
        %1427 = vmatpush1.xpose.msra.mxu0 0.0
        %1428 = vmatprep.subr.mxu0 0.0
        %1429 = vmatpush1.xpose.msra.mxu0 0.0
        %1430 = vmatprep.subr.mxu0 0.0
        %1431 = vmatpush1.xpose.msra.mxu0 0.0
        %1432 = vmatprep.subr.mxu0 0.0
        %1433 = vmatpush1.xpose.msra.mxu0 0.0
        %1434 = vmatprep.subr.mxu0 0.0
        %1435 = vmatpush1.xpose.msra.mxu0 0.0
        %1436 = vmatprep.subr.mxu0 0.0
        %1437 = vmatpush1.xpose.msra.mxu0 0.0
        %1438 = vmatprep.subr.mxu0 0.0
        %1439 = vmatpush1.xpose.msra.mxu0 0.0
        %1440 = vmatprep.subr.mxu0 0.0
        %1441 = vmatpush1.xpose.msra.mxu0 0.0
        %1442 = vmatprep.subr.mxu0 0.0
        %1443 = vmatpush1.xpose.msra.mxu0 0.0
        %1444 = vmatprep.subr.mxu0 0.0
        %1445 = vmatpush1.xpose.msra.mxu0 0.0
        %1446 = vmatprep.subr.mxu0 0.0
        %1447 = vmatpush1.xpose.msra.mxu0 0.0
        %1448 = vmatprep.subr.mxu0 0.0
        %1449 = vmatpush1.xpose.msra.mxu0 0.0
        %1450 = vmatprep.subr.mxu0 0.0
        %1451 = vmatpush1.xpose.msra.mxu0 0.0
        %1452 = vmatprep.subr.mxu0 0.0
        %1453 = vmatpush1.xpose.msra.mxu0 0.0
        %1454 = vmatprep.subr.mxu0 0.0
        %1455 = vmatpush1.xpose.msra.mxu0 0.0
        %1456 = vmatprep.subr.mxu0 0.0
        %1457 = vmatpush1.xpose.msra.mxu0 0.0
        %1458 = vmatprep.subr.mxu0 0.0
        %1459 = vmatpush1.xpose.msra.mxu0 0.0
        %1460 = vmatprep.subr.mxu0 0.0
        %1461 = vmatpush1.xpose.msra.mxu0 0.0
        %1462 = vmatprep.subr.mxu0 0.0
        %1463 = vmatpush1.xpose.msra.mxu0 0.0
        %1464 = vmatprep.subr.mxu0 0.0
        %1465 = vmatpush1.xpose.msra.mxu0 0.0
        %1466 = vmatprep.subr.mxu0 0.0
        %1467 = vmatpush1.xpose.msra.mxu0 0.0
        %1468 = vmatprep.subr.mxu0 0.0
        %1469 = vmatpush1.xpose.msra.mxu0 0.0
        %1470 = vmatprep.subr.mxu0 0.0
        %1471 = vmatpush1.xpose.msra.mxu0 0.0
        %1472 = vmatprep.subr.mxu0 0.0
        %1473 = vmatpush1.xpose.msra.mxu0 0.0
        %1474 = vmatprep.subr.mxu0 0.0
        %1475 = vmatpush1.xpose.msra.mxu0 0.0
        %1476 = vmatprep.subr.mxu0 0.0
        %1477 = vmatpush1.xpose.msra.mxu0 0.0
        %1478 = vmatprep.subr.mxu0 0.0
        %1479 = vmatpush1.xpose.msra.mxu0 0.0
        %1480 = vmatprep.subr.mxu0 0.0
        %1481 = vmatpush1.xpose.msra.mxu0 0.0
        %1482 = vmatprep.mubr.f32.mxu0 0.0
        %1483 = vmatmul.mubr.f32.gmra.mrb[0].mxu0 %v1414
        %v1484 = vpop.f32.mrb[0].mxu0
        %v1485 = vadd.f32 0.0, %v1484
        %v1486 = vpop.f32.mrb[0].mxu0
        %1487 = vdwg.mxu0
        %v1488 = vsel %vm685, -1e+30, %v1485
        %v1489 = vsel %vm764, %v1488, -inf
        %1490 = vmax.xlane.f32.xlu0 %v1489
        %v1491 = vpop.xlane.xlu0 %1490
        %v1492 = vsub.f32 %v1488, %v1491
        %v1493 = vmul.f32 %v1492, 1.442695
        %v1494 = vpow.pop %v1493
        %v1495 = vsel %vm764, %v1494, 0.0
        %1496 = vadd.xlane.f32.xlu0 %v1495
        %v1497 = vpop.xlane.xlu0 %1496
        %v1498 = vrcp.pop %v1497
        %v1499 = vmul.f32 %v1494, %v1498
        %v1500 = vadd.f32 %v1258, %v1499
        %1501 = vrot.lane.b32.xlu0 %v582, 72
        %v1502 = vpop.permute.xlu0 %1501
        %v1505 = vsel %vm686, %v1499, 0
        %1507 = vmatprep.subr.mxu0 0.0
        %1508 = vmatpush1.msra.mxu0 %v1502
        %1509 = vmatprep.subr.mxu0 0.0
        %1510 = vmatpush1.msra.mxu0 0.0
        %1511 = vmatprep.subr.mxu0 0.0
        %1512 = vmatpush1.msra.mxu0 0.0
        %1513 = vmatprep.subr.mxu0 0.0
        %1514 = vmatpush1.msra.mxu0 0.0
        %1515 = vmatprep.subr.mxu0 0.0
        %1516 = vmatpush1.msra.mxu0 0.0
        %1517 = vmatprep.subr.mxu0 0.0
        %1518 = vmatpush1.msra.mxu0 0.0
        %1519 = vmatprep.subr.mxu0 0.0
        %1520 = vmatpush1.msra.mxu0 0.0
        %1521 = vmatprep.subr.mxu0 0.0
        %1522 = vmatpush1.msra.mxu0 0.0
        %1523 = vmatprep.subr.mxu0 0.0
        %1524 = vmatpush1.msra.mxu0 0.0
        %1525 = vmatprep.subr.mxu0 0.0
        %1526 = vmatpush1.msra.mxu0 0.0
        %1527 = vmatprep.subr.mxu0 0.0
        %1528 = vmatpush1.msra.mxu0 0.0
        %1529 = vmatprep.subr.mxu0 0.0
        %1530 = vmatpush1.msra.mxu0 0.0
        %1531 = vmatprep.subr.mxu0 0.0
        %1532 = vmatpush1.msra.mxu0 0.0
        %1533 = vmatprep.subr.mxu0 0.0
        %1534 = vmatpush1.msra.mxu0 0.0
        %1535 = vmatprep.subr.mxu0 0.0
        %1536 = vmatpush1.msra.mxu0 0.0
        %1537 = vmatprep.subr.mxu0 0.0
        %1538 = vmatpush1.msra.mxu0 0.0
        %1539 = vmatprep.subr.mxu0 0.0
        %1540 = vmatpush1.msra.mxu0 0.0
        %1541 = vmatprep.subr.mxu0 0.0
        %1542 = vmatpush1.msra.mxu0 0.0
        %1543 = vmatprep.subr.mxu0 0.0
        %1544 = vmatpush1.msra.mxu0 0.0
        %1545 = vmatprep.subr.mxu0 0.0
        %1546 = vmatpush1.msra.mxu0 0.0
        %1547 = vmatprep.subr.mxu0 0.0
        %1548 = vmatpush1.msra.mxu0 0.0
        %1549 = vmatprep.subr.mxu0 0.0
        %1550 = vmatpush1.msra.mxu0 0.0
        %1551 = vmatprep.subr.mxu0 0.0
        %1552 = vmatpush1.msra.mxu0 0.0
        %1553 = vmatprep.subr.mxu0 0.0
        %1554 = vmatpush1.msra.mxu0 0.0
        %1555 = vmatprep.subr.mxu0 0.0
        %1556 = vmatpush1.msra.mxu0 0.0
        %1557 = vmatprep.subr.mxu0 0.0
        %1558 = vmatpush1.msra.mxu0 0.0
        %1559 = vmatprep.subr.mxu0 0.0
        %1560 = vmatpush1.msra.mxu0 0.0
        %1561 = vmatprep.subr.mxu0 0.0
        %1562 = vmatpush1.msra.mxu0 0.0
        %1563 = vmatprep.subr.mxu0 0.0
        %1564 = vmatpush1.msra.mxu0 0.0
        %1565 = vmatprep.subr.mxu0 0.0
        %1566 = vmatpush1.msra.mxu0 0.0
        %1567 = vmatprep.subr.mxu0 0.0
        %1568 = vmatpush1.msra.mxu0 0.0
        %1569 = vmatprep.subr.mxu0 0.0
        %1570 = vmatpush1.msra.mxu0 0.0
        %1571 = vmatprep.mubr.f32.mxu0 0.0
        %1572 = vmatmul.mubr.f32.gmra.mrb[0].mxu0 %v1505
        %v1573 = vpop.f32.mrb[0].mxu0
        %v1574 = vadd.f32 0.0, %v1573
        %v1575 = vpop.f32.mrb[0].mxu0
        %1576 = vdwg.mxu0
        %v1577 = vld [vmem:[#allocation11 + $0x18] sm:$0xff]
        %v1579 = vsel %vm686, %v1574, 0
        %1581 = vmatprep.subr.mxu0 0.0
        %1582 = vmatpush1.msra.mxu0 %v1577
        %1583 = vmatprep.subr.mxu0 0.0
        %1584 = vmatpush1.msra.mxu0 0.0
        %1585 = vmatprep.subr.mxu0 0.0
        %1586 = vmatpush1.msra.mxu0 0.0
        %1587 = vmatprep.subr.mxu0 0.0
        %1588 = vmatpush1.msra.mxu0 0.0
        %1589 = vmatprep.subr.mxu0 0.0
        %1590 = vmatpush1.msra.mxu0 0.0
        %1591 = vmatprep.subr.mxu0 0.0
        %1592 = vmatpush1.msra.mxu0 0.0
        %1593 = vmatprep.subr.mxu0 0.0
        %1594 = vmatpush1.msra.mxu0 0.0
        %1595 = vmatprep.subr.mxu0 0.0
        %1596 = vmatpush1.msra.mxu0 0.0
        %1597 = vmatprep.subr.mxu0 0.0
        %1598 = vmatpush1.msra.mxu0 0.0
        %1599 = vmatprep.subr.mxu0 0.0
        %1600 = vmatpush1.msra.mxu0 0.0
        %1601 = vmatprep.subr.mxu0 0.0
        %1602 = vmatpush1.msra.mxu0 0.0
        %1603 = vmatprep.subr.mxu0 0.0
        %1604 = vmatpush1.msra.mxu0 0.0
        %1605 = vmatprep.subr.mxu0 0.0
        %1606 = vmatpush1.msra.mxu0 0.0
        %1607 = vmatprep.subr.mxu0 0.0
        %1608 = vmatpush1.msra.mxu0 0.0
        %1609 = vmatprep.subr.mxu0 0.0
        %1610 = vmatpush1.msra.mxu0 0.0
        %1611 = vmatprep.subr.mxu0 0.0
        %1612 = vmatpush1.msra.mxu0 0.0
        %1613 = vmatprep.subr.mxu0 0.0
        %1614 = vmatpush1.msra.mxu0 0.0
        %1615 = vmatprep.subr.mxu0 0.0
        %1616 = vmatpush1.msra.mxu0 0.0
        %1617 = vmatprep.subr.mxu0 0.0
        %1618 = vmatpush1.msra.mxu0 0.0
        %1619 = vmatprep.subr.mxu0 0.0
        %1620 = vmatpush1.msra.mxu0 0.0
        %1621 = vmatprep.subr.mxu0 0.0
        %1622 = vmatpush1.msra.mxu0 0.0
        %1623 = vmatprep.subr.mxu0 0.0
        %1624 = vmatpush1.msra.mxu0 0.0
        %1625 = vmatprep.subr.mxu0 0.0
        %1626 = vmatpush1.msra.mxu0 0.0
        %1627 = vmatprep.subr.mxu0 0.0
        %1628 = vmatpush1.msra.mxu0 0.0
        %1629 = vmatprep.subr.mxu0 0.0
        %1630 = vmatpush1.msra.mxu0 0.0
        %1631 = vmatprep.subr.mxu0 0.0
        %1632 = vmatpush1.msra.mxu0 0.0
        %1633 = vmatprep.subr.mxu0 0.0
        %1634 = vmatpush1.msra.mxu0 0.0
        %1635 = vmatprep.subr.mxu0 0.0
        %1636 = vmatpush1.msra.mxu0 0.0
        %1637 = vmatprep.subr.mxu0 0.0
        %1638 = vmatpush1.msra.mxu0 0.0
        %1639 = vmatprep.subr.mxu0 0.0
        %1640 = vmatpush1.msra.mxu0 0.0
        %1641 = vmatprep.subr.mxu0 0.0
        %1642 = vmatpush1.msra.mxu0 0.0
        %1643 = vmatprep.subr.mxu0 0.0
        %1644 = vmatpush1.msra.mxu0 0.0
        %1645 = vmatprep.mubr.f32.mxu0 0.0
        %1646 = vmatmul.mubr.f32.gmra.mrb[0].mxu0 %v1579
        %v1647 = vpop.f32.mrb[0].mxu0
        %v1648 = vadd.f32 0.0, %v1647
        %v1649 = vpop.f32.mrb[0].mxu0
        %1650 = vdwg.mxu0
        %v1651 = vadd.f32 %v1409, %v1648
        %v1652 = vld [vmem:[%s8] sm:$0x1]
        %v1654 = vlaneseq
        %v1655 = vshrl.u32 %v1654, 7
        %v1656 = vsub.s32 0, %v1655
        %v1657 = vrot.slane %v1652, %v1656
        %v1659 = vadd.f32 %v1651, %v1657
        %v1660 = vadd.f32 %v1659, %v499
        %vm1661 = vcmask 257024
        %1662 = vst.msk [vmem:[%s490] sm:$0xf] %vm1661, %v1660
        %v1663 = vmul.f32 %v1500, 0.25
        %1664 = vst.msk [vmem:[%s497] sm:$0xf] %vm764, %v1663
        %s1665 = sand.u32 %s248, 1
        %s1666 = scalar_lea.sflag [#allocation4], %s1665
        %s1667 = sand.u32 %s248, 1
        %s1668 = smul.addr %s1667, 4
        %s1669 = scalar_lea.vmem [#allocation13], %s1668
        %s1670 = sand.u32 %s274, 1
        %s1671 = scalar_lea.sflag [#allocation15], %s1670
        %s1672 = sand.u32 %s274, 1
        %s1673 = smul.addr %s1672, 4
        %s1674 = scalar_lea.vmem [#allocation14], %s1673
        // Predicated region
        $region81: #{tpu_custom_call.1} parent=55 // pred_check
          %p1675 = pneg %p258
        $region82: #{tpu_custom_call.1} parent=55 // pred_check_branch
          %1677 = sbr.rel (%p1675) target = $region84
        $region83: #{tpu_custom_call.1} parent=55 // pred_region
          %s1679 = ssub.s32 64, 64
          %1680 = vsyncadd %s1666, %s1679
          %s1681 = smul.addr %s36, 64
          %s1682 = scalar_lea.hbm %s9, %s1681
          %s1684 = sshll.u32 %s1669, 4
          %s1685 = int_to_ptr.vmem [resolvable:$true] %s1684
          %1687 = dma.vmem_to_hbm [thread:$0]  %s1685, 64, %s1682, %s1666
        $region84: #{tpu_custom_call.1} parent=55 // pred_fallthru
          _
        // Predicated region
        $region85: #{tpu_custom_call.1} parent=55 // pred_check
          %p1688 = pneg %p284
        $region86: #{tpu_custom_call.1} parent=55 // pred_check_branch
          %1690 = sbr.rel (%p1688) target = $region88
        $region87: #{tpu_custom_call.1} parent=55 // pred_region
          %s1692 = ssub.s32 64, 64
          %1693 = vsyncadd %s1671, %s1692
          %s1694 = smul.addr %s36, 64
          %s1695 = scalar_lea.hbm %s10, %s1694
          %s1697 = sshll.u32 %s1674, 4
          %s1698 = int_to_ptr.vmem [resolvable:$true] %s1697
          %1700 = dma.vmem_to_hbm [thread:$0]  %s1698, 64, %s1695, %s1671
        $region88: #{tpu_custom_call.1} parent=55 // pred_fallthru
          _
      $region56: #{tpu_custom_call.1} parent=5 // pred_fallthru
        _
      %p1701 = scmp.le.s32.totalorder 2, %s31
      // Predicated region
      $region89: #{tpu_custom_call.1} parent=5 // pred_check
        %p1702 = pneg %p1701
      $region90: #{tpu_custom_call.1} parent=5 // pred_check_branch
        %1704 = sbr.rel (%p1702) target = $region92
      $region91: #{tpu_custom_call.1} parent=5 // pred_region
        %s1705 = ssub.s32 %s31, 2
        // Predicated region
        $region93: #{tpu_custom_call.1} parent=91 // pred_check
          %p1706 = pneg %p264
        $region94: #{tpu_custom_call.1} parent=91 // pred_check_branch
          %1708 = sbr.rel (%p1706) target = $region96
        $region95: #{tpu_custom_call.1} parent=91 // pred_region
          %s1709 = sand.u32 %s249, 1
          %s1710 = scalar_lea.sflag [#allocation4], %s1709
          %s1711 = sand.u32 %s249, 1
          %s1712 = smul.addr %s1711, 4
          %s1713 = scalar_lea.vmem [#allocation13], %s1712
          %1714 = dma.done %s1710, 64
        $region96: #{tpu_custom_call.1} parent=91 // pred_fallthru
          _
        // Predicated region
        $region97: #{tpu_custom_call.1} parent=91 // pred_check
          %p1715 = pneg %p290
        $region98: #{tpu_custom_call.1} parent=91 // pred_check_branch
          %1717 = sbr.rel (%p1715) target = $region100
        $region99: #{tpu_custom_call.1} parent=91 // pred_region
          %s1718 = sand.u32 %s275, 1
          %s1719 = scalar_lea.sflag [#allocation15], %s1718
          %s1720 = sand.u32 %s275, 1
          %s1721 = smul.addr %s1720, 4
          %s1722 = scalar_lea.vmem [#allocation14], %s1721
          %1723 = dma.done %s1719, 64
        $region100: #{tpu_custom_call.1} parent=91 // pred_fallthru
          _
      $region92: #{tpu_custom_call.1} parent=5 // pred_fallthru
        _
    $region6: #{tpu_custom_call.1} parent=1 // loop_footer
      %s35 = sadd.s32 1, %s31
    $region7: #{tpu_custom_call.1} parent=1 // loop_footer_branch
      %30 = sbr.rel target = $region3
    $region8: #{tpu_custom_call.1} parent=1 // loop_exit
      _
    %1724 = vsyncpa [#allocation3], 1
    %s1725 = scalar_lea.sflag [#allocation3], 1
    %1726 = vsyncpa %s1725, 1
    %1727 = vsyncpa [#allocation6], 1
    %s1728 = scalar_lea.sflag [#allocation6], 1
    %1729 = vsyncpa %s1728, 1
    %1730 = vsyncpa [#allocation9], 1
    %1731 = vsyncpa [#allocation12], 1
    %1732 = vsyncpa [#allocation4], 1
    %s1733 = scalar_lea.sflag [#allocation4], 1
    %1734 = vsyncpa %s1733, 1
    %1735 = vsyncpa [#allocation15], 1
    %s1736 = scalar_lea.sflag [#allocation15], 1
    %1737 = vsyncpa %s1736, 1

</llo_original>
